<compile_context>
chip_gen: v7x
topology: tpu7x:2x2x1
jax: 0.10.0
libtpu: 0.0.40
codegen_flags: <defaults>
</compile_context>

<pallas_src>
import functools
import math

import jax
import jax.numpy as jnp
from jax.experimental import pallas as pl
from jax.experimental.pallas import tpu as pltpu


# ---------------------------------------------------------------------------
# Shared STDCov body:  sigmoid( Conv2d_{(K,1)}( Linear_N(x) + x ) )
#   x_ref      : VMEM (B*C*T, N) f32, rows ordered [b*C*T + c*T + t]
#   wlin_t_ref : VMEM (N, N)     bf16, Linear weight already transposed (x @ W^T)
#   blin_ref   : VMEM (1, N)     f32, Linear bias
#   wconv_ref  : SMEM (Co*C*K,)  f32, conv weights flattened as [o*C*K + c*K + k]
#   bconv_ref  : SMEM (Co,)      f32, conv bias
# Returns B slabs, each (Co*Tout, N) f32 with rows ordered [o*Tout + t]
# (exactly the [c, t] row order the next layer expects).
# ---------------------------------------------------------------------------
def _stdconv_body(x_ref, wlin_t_ref, blin_ref, wconv_ref, bconv_ref,
                  *, B, C, T, K, Co):
    N = x_ref.shape[-1]
    Tout = T - K + 1

    x = x_ref[...]                                               # (B*C*T, N) f32
    # Linear over the node dim: one big-M bf16 MXU matmul, f32 accumulation.
    lin = jnp.dot(x.astype(jnp.bfloat16), wlin_t_ref[...],
                  preferred_element_type=jnp.float32)
    z = lin + blin_ref[...] + x                                  # bias hoisted; residual add

    # Hoist all SMEM scalar reads out of the unrolled accumulation loops.
    wvals = [[[wconv_ref[o * C * K + c * K + k] for k in range(K)]
              for c in range(C)] for o in range(Co)]
    bvals = [bconv_ref[o] for o in range(Co)]

    slabs = []
    for b in range(B):
        accs = [None] * Co
        for c in range(C):
            base = b * C * T + c * T
            for k in range(K):
                # Slice the shifted sub-slab ONCE per (c, k); reuse for all Co channels.
                sub = z[base + k: base + k + Tout, :]            # (Tout, N)
                for o in range(Co):
                    term = wvals[o][c][k] * sub
                    accs[o] = term if accs[o] is None else accs[o] + term
        rows = [jax.nn.sigmoid(accs[o] + bvals[o]) for o in range(Co)]
        slabs.append(jnp.concatenate(rows, axis=0))              # (Co*Tout, N)
    return slabs


def stdconv_kernel(x_ref, wlin_t_ref, blin_ref, wconv_ref, bconv_ref, o_ref,
                   *, B, C, T, K, Co):
    slabs = _stdconv_body(x_ref, wlin_t_ref, blin_ref, wconv_ref, bconv_ref,
                          B=B, C=C, T=T, K=K, Co=Co)
    # One contiguous (B*Co*Tout, N) store (B*Co*Tout is a multiple of 8 -> unmasked).
    o_ref[...] = jnp.concatenate(slabs, axis=0).astype(o_ref.dtype)


def stdconv_output_kernel(x_ref, wlin_t_ref, blin_ref, wconv_ref, bconv_ref,
                          wout_ref, bout_ref, feat_ref, logits_ref,
                          *, B, C, T, K, Co):
    slabs = _stdconv_body(x_ref, wlin_t_ref, blin_ref, wconv_ref, bconv_ref,
                          B=B, C=C, T=T, K=K, Co=Co)
    feat_ref[...] = jnp.concatenate(slabs, axis=0).astype(feat_ref.dtype)
    # Fused OutputLayer:  logits[b, n] = sigmoid( sum_{o,t} W[o,t] * h[b,o,t,n] + bias )
    logit_rows = []
    for b in range(B):
        y = jnp.dot(wout_ref[...], slabs[b],
                    preferred_element_type=jnp.float32) + bout_ref[0]   # (1, N)
        logit_rows.append(jax.nn.sigmoid(y))
    logits_ref[...] = jnp.concatenate(logit_rows, axis=0).astype(logits_ref.dtype)


# ---------------------------------------------------------------------------
# pallas_call wrappers (single kernel invocation per layer; whole batch in VMEM)
# ---------------------------------------------------------------------------
def stdconv_layer(x2d, wlin_t_bf16, blin, wconv_flat, bconv, *, B, C, T, K, Co):
    N = x2d.shape[-1]
    Tout = T - K + 1
    kernel = functools.partial(stdconv_kernel, B=B, C=C, T=T, K=K, Co=Co)
    return pl.pallas_call(
        kernel,
        out_shape=jax.ShapeDtypeStruct((B * Co * Tout, N), jnp.float32),
        grid=(1,),
        in_specs=[
            pl.BlockSpec((B * C * T, N), lambda i: (0, 0)),
            pl.BlockSpec((N, N), lambda i: (0, 0)),
            pl.BlockSpec((1, N), lambda i: (0, 0)),
            pl.BlockSpec(memory_space=pltpu.MemorySpace.SMEM),
            pl.BlockSpec(memory_space=pltpu.MemorySpace.SMEM),
        ],
        out_specs=pl.BlockSpec((B * Co * Tout, N), lambda i: (0, 0)),
        compiler_params=pltpu.CompilerParams(dimension_semantics=("arbitrary",)),
    )(x2d, wlin_t_bf16, blin, wconv_flat, bconv)


def stdconv_output_layer(x2d, wlin_t_bf16, blin, wconv_flat, bconv,
                         wout_row, bout, *, B, C, T, K, Co):
    N = x2d.shape[-1]
    Tout = T - K + 1
    kernel = functools.partial(stdconv_output_kernel, B=B, C=C, T=T, K=K, Co=Co)
    feats2d, logits = pl.pallas_call(
        kernel,
        out_shape=(jax.ShapeDtypeStruct((B * Co * Tout, N), jnp.float32),
                   jax.ShapeDtypeStruct((B, N), jnp.float32)),
        grid=(1,),
        in_specs=[
            pl.BlockSpec((B * C * T, N), lambda i: (0, 0)),
            pl.BlockSpec((N, N), lambda i: (0, 0)),
            pl.BlockSpec((1, N), lambda i: (0, 0)),
            pl.BlockSpec(memory_space=pltpu.MemorySpace.SMEM),
            pl.BlockSpec(memory_space=pltpu.MemorySpace.SMEM),
            pl.BlockSpec((1, Co * Tout), lambda i: (0, 0)),
            pl.BlockSpec(memory_space=pltpu.MemorySpace.SMEM),
        ],
        out_specs=(pl.BlockSpec((B * Co * Tout, N), lambda i: (0, 0)),
                   pl.BlockSpec((B, N), lambda i: (0, 0))),
        compiler_params=pltpu.CompilerParams(dimension_semantics=("arbitrary",)),
    )(x2d, wlin_t_bf16, blin, wconv_flat, bconv, wout_row, bout)
    return feats2d, logits


# ---------------------------------------------------------------------------
# DCNN forward (Pallas): returns (logits (B, N), last-layer features (B, C, T, N))
# ---------------------------------------------------------------------------
def dcnn_forward(x, params):
    B, C, T, N = x.shape
    h2d = x.reshape(B * C * T, N)                # glue reshape (plain JAX)
    layers = params["layers"]
    for lp in layers[:-1]:
        K = lp["K"]
        Co = lp["bconv"].shape[0]
        h2d = stdconv_layer(h2d, lp["wlin_t_bf16"], lp["blin"],
                            lp["wconv_flat"], lp["bconv"],
                            B=B, C=C, T=T, K=K, Co=Co)
        T = T - K + 1
        C = Co
    lp = layers[-1]
    K = lp["K"]
    Co = lp["bconv"].shape[0]
    feats2d, logits = stdconv_output_layer(
        h2d, lp["wlin_t_bf16"], lp["blin"], lp["wconv_flat"], lp["bconv"],
        params["out_w_row"], params["out_b"],
        B=B, C=C, T=T, K=K, Co=Co)
    T = T - K + 1
    C = Co
    feats = feats2d.reshape(B, C, T, N)
    return logits, feats


# ---------------------------------------------------------------------------
# Deterministic synthetic parameter init (shapes follow the PyTorch __init__).
# ---------------------------------------------------------------------------
def init_params(key, x_shape, K, c_out):
    B, C, T, N = x_shape
    params = {"layers": []}
    for co in c_out:
        key, k1, k2, k3, k4 = jax.random.split(key, 5)
        wlin_t = jax.random.normal(k1, (N, N), jnp.float32) / math.sqrt(N)
        blin = jax.random.normal(k2, (1, N), jnp.float32) * 0.01
        wconv = jax.random.normal(k3, (co, C, K), jnp.float32) / math.sqrt(C * K)
        bconv = jax.random.normal(k4, (co,), jnp.float32) * 0.01
        params["layers"].append({
            "wlin_t": wlin_t,
            "wlin_t_bf16": wlin_t.astype(jnp.bfloat16),   # MXU path weight
            "blin": blin,
            "wconv": wconv, "wconv_flat": wconv.reshape(-1),
            "bconv": bconv, "K": K,
        })
        T = T - K + 1
        C = co
    key, k1, k2 = jax.random.split(key, 3)
    wout = jax.random.normal(k1, (C, T), jnp.float32) / math.sqrt(C * T)
    bout = jax.random.normal(k2, (1,), jnp.float32) * 0.01
    params["out_w_row"] = wout.reshape(1, C * T)          # row order [c*T + t]
    params["out_b"] = bout
    return params


# Pure-JAX f32 reference of the same forward pass (for correctness check).
def ref_forward(x, params):
    h = x
    for lp in params["layers"]:
        B, C, T, N = h.shape
        K = lp["K"]
        lin = h.reshape(-1, N) @ lp["wlin_t"] + lp["blin"]
        z = lin.reshape(B, C, T, N) + h
        wconv = lp["wconv"]
        Co = wconv.shape[0]
        Tout = T - K + 1
        out = jnp.zeros((B, Co, Tout, N), jnp.float32)
        for k in range(K):
            out = out + jnp.einsum("oc,bctn->botn",
                                   wconv[:, :, k], z[:, :, k:k + Tout, :])
        out = out + lp["bconv"].reshape(1, Co, 1, 1)
        h = jax.nn.sigmoid(out)
    B, C, T, N = h.shape
    logits = jax.nn.sigmoid(
        jnp.einsum("r,brn->bn", params["out_w_row"].reshape(-1),
                   h.reshape(B, C * T, N)) + params["out_b"][0])
    return logits, h


if __name__ == "__main__":
    # x_shape = [B, C, T, N], Kernel_size = 3, c_out = [8, 8], cls = 1
    B, C, T, N = 2, 4, 16, 128
    K = 3
    c_out = [8, 8]

    key = jax.random.PRNGKey(0)
    kx, kp = jax.random.split(key)
    x = jax.random.normal(kx, (B, C, T, N), jnp.float32)
    params = init_params(kp, (B, C, T, N), K, c_out)

    logits, feats = dcnn_forward(x, params)
    jax.block_until_ready((logits, feats))

    ref_logits, ref_feats = ref_forward(x, params)
    assert logits.shape == (B, N)
    assert feats.shape == (B, c_out[-1], T - 2 * (K - 1), N)
    # Kernel runs the Linear on the bf16 MXU path (f32 accumulation); the reference
    # stays in f32, so allow a small bf16-rounding tolerance (outputs are in (0,1)).
    err_logits = float(jnp.max(jnp.abs(logits - ref_logits)))
    err_feats = float(jnp.max(jnp.abs(feats - ref_feats)))
    assert err_logits < 2e-2, err_logits
    assert err_feats < 2e-2, err_feats

    print("KERNEL_OK")
</pallas_src>

<mosaic_0001>
module attributes {stable_mosaic.version = 11 : i64} {
  func.func @stdconv_kernel(%arg0: i32, %arg1: memref<128x128xf32, #tpu.memory_space<vmem>>, %arg2: memref<128x128xbf16, #tpu.memory_space<vmem>>, %arg3: memref<1x128xf32, #tpu.memory_space<vmem>>, %arg4: memref<96xf32, #tpu.memory_space<smem>>, %arg5: memref<8xf32, #tpu.memory_space<smem>>, %arg6: memref<224x128xf32, #tpu.memory_space<vmem>>) attributes {dimension_semantics = [#tpu.dimension_semantics<arbitrary>], iteration_bounds = array<i64: 1>, scalar_prefetch = 0 : i64, scratch_operands = 0 : i64, tpu.core_type = #tpu.core_type<tc>, window_params = [{pipeline_mode = #tpu.pipeline_mode<synchronous>, transform_indices = @transform_0, window_bounds = array<i64: 128, 128>}, {pipeline_mode = #tpu.pipeline_mode<synchronous>, transform_indices = @transform_1, window_bounds = array<i64: 128, 128>}, {pipeline_mode = #tpu.pipeline_mode<synchronous>, transform_indices = @transform_2, window_bounds = array<i64: 1, 128>}, {transform_indices = @transform_3, window_bounds = array<i64: 96>}, {transform_indices = @transform_4, window_bounds = array<i64: 8>}, {pipeline_mode = #tpu.pipeline_mode<synchronous>, transform_indices = @transform_5, window_bounds = array<i64: 224, 128>}]} {
    %c0 = arith.constant 0 : index
    %c0_0 = arith.constant 0 : index
    %0 = vector.load %arg1[%c0, %c0_0] : memref<128x128xf32, #tpu.memory_space<vmem>>, vector<128x128xf32>
    %1 = arith.truncf %0 : vector<128x128xf32> to vector<128x128xbf16>
    %c0_1 = arith.constant 0 : index
    %c0_2 = arith.constant 0 : index
    %2 = vector.load %arg2[%c0_1, %c0_2] : memref<128x128xbf16, #tpu.memory_space<vmem>>, vector<128x128xbf16>
    %cst = arith.constant dense<0.000000e+00> : vector<128x128xf32>
    %3 = tpu.matmul %1, %2, %cst {dimension_numbers = #tpu.dot_dimension_numbers<[1], [0], [0], [1], [0, 0, 1, 1], [], []>} : vector<128x128xbf16>, vector<128x128xbf16>, vector<128x128xf32> -> vector<128x128xf32>
    %c0_3 = arith.constant 0 : index
    %c0_4 = arith.constant 0 : index
    %4 = vector.load %arg3[%c0_3, %c0_4] : memref<1x128xf32, #tpu.memory_space<vmem>>, vector<1x128xf32>
    %5 = vector.broadcast %4 : vector<1x128xf32> to vector<128x128xf32>
    %6 = arith.addf %3, %5 : vector<128x128xf32>
    %7 = arith.addf %6, %0 : vector<128x128xf32>
    %c0_5 = arith.constant 0 : index
    %8 = memref.load %arg4[%c0_5] : memref<96xf32, #tpu.memory_space<smem>>
    %c1 = arith.constant 1 : index
    %9 = memref.load %arg4[%c1] : memref<96xf32, #tpu.memory_space<smem>>
    %c2 = arith.constant 2 : index
    %10 = memref.load %arg4[%c2] : memref<96xf32, #tpu.memory_space<smem>>
    %c3 = arith.constant 3 : index
    %11 = memref.load %arg4[%c3] : memref<96xf32, #tpu.memory_space<smem>>
    %c4 = arith.constant 4 : index
    %12 = memref.load %arg4[%c4] : memref<96xf32, #tpu.memory_space<smem>>
    %c5 = arith.constant 5 : index
    %13 = memref.load %arg4[%c5] : memref<96xf32, #tpu.memory_space<smem>>
    %c6 = arith.constant 6 : index
    %14 = memref.load %arg4[%c6] : memref<96xf32, #tpu.memory_space<smem>>
    %c7 = arith.constant 7 : index
    %15 = memref.load %arg4[%c7] : memref<96xf32, #tpu.memory_space<smem>>
    %c8 = arith.constant 8 : index
    %16 = memref.load %arg4[%c8] : memref<96xf32, #tpu.memory_space<smem>>
    %c9 = arith.constant 9 : index
    %17 = memref.load %arg4[%c9] : memref<96xf32, #tpu.memory_space<smem>>
    %c10 = arith.constant 10 : index
    %18 = memref.load %arg4[%c10] : memref<96xf32, #tpu.memory_space<smem>>
    %c11 = arith.constant 11 : index
    %19 = memref.load %arg4[%c11] : memref<96xf32, #tpu.memory_space<smem>>
    %c12 = arith.constant 12 : index
    %20 = memref.load %arg4[%c12] : memref<96xf32, #tpu.memory_space<smem>>
    %c13 = arith.constant 13 : index
    %21 = memref.load %arg4[%c13] : memref<96xf32, #tpu.memory_space<smem>>
    %c14 = arith.constant 14 : index
    %22 = memref.load %arg4[%c14] : memref<96xf32, #tpu.memory_space<smem>>
    %c15 = arith.constant 15 : index
    %23 = memref.load %arg4[%c15] : memref<96xf32, #tpu.memory_space<smem>>
    %c16 = arith.constant 16 : index
    %24 = memref.load %arg4[%c16] : memref<96xf32, #tpu.memory_space<smem>>
    %c17 = arith.constant 17 : index
    %25 = memref.load %arg4[%c17] : memref<96xf32, #tpu.memory_space<smem>>
    %c18 = arith.constant 18 : index
    %26 = memref.load %arg4[%c18] : memref<96xf32, #tpu.memory_space<smem>>
    %c19 = arith.constant 19 : index
    %27 = memref.load %arg4[%c19] : memref<96xf32, #tpu.memory_space<smem>>
    %c20 = arith.constant 20 : index
    %28 = memref.load %arg4[%c20] : memref<96xf32, #tpu.memory_space<smem>>
    %c21 = arith.constant 21 : index
    %29 = memref.load %arg4[%c21] : memref<96xf32, #tpu.memory_space<smem>>
    %c22 = arith.constant 22 : index
    %30 = memref.load %arg4[%c22] : memref<96xf32, #tpu.memory_space<smem>>
    %c23 = arith.constant 23 : index
    %31 = memref.load %arg4[%c23] : memref<96xf32, #tpu.memory_space<smem>>
    %c24 = arith.constant 24 : index
    %32 = memref.load %arg4[%c24] : memref<96xf32, #tpu.memory_space<smem>>
    %c25 = arith.constant 25 : index
    %33 = memref.load %arg4[%c25] : memref<96xf32, #tpu.memory_space<smem>>
    %c26 = arith.constant 26 : index
    %34 = memref.load %arg4[%c26] : memref<96xf32, #tpu.memory_space<smem>>
    %c27 = arith.constant 27 : index
    %35 = memref.load %arg4[%c27] : memref<96xf32, #tpu.memory_space<smem>>
    %c28 = arith.constant 28 : index
    %36 = memref.load %arg4[%c28] : memref<96xf32, #tpu.memory_space<smem>>
    %c29 = arith.constant 29 : index
    %37 = memref.load %arg4[%c29] : memref<96xf32, #tpu.memory_space<smem>>
    %c30 = arith.constant 30 : index
    %38 = memref.load %arg4[%c30] : memref<96xf32, #tpu.memory_space<smem>>
    %c31 = arith.constant 31 : index
    %39 = memref.load %arg4[%c31] : memref<96xf32, #tpu.memory_space<smem>>
    %c32 = arith.constant 32 : index
    %40 = memref.load %arg4[%c32] : memref<96xf32, #tpu.memory_space<smem>>
    %c33 = arith.constant 33 : index
    %41 = memref.load %arg4[%c33] : memref<96xf32, #tpu.memory_space<smem>>
    %c34 = arith.constant 34 : index
    %42 = memref.load %arg4[%c34] : memref<96xf32, #tpu.memory_space<smem>>
    %c35 = arith.constant 35 : index
    %43 = memref.load %arg4[%c35] : memref<96xf32, #tpu.memory_space<smem>>
    %c36 = arith.constant 36 : index
    %44 = memref.load %arg4[%c36] : memref<96xf32, #tpu.memory_space<smem>>
    %c37 = arith.constant 37 : index
    %45 = memref.load %arg4[%c37] : memref<96xf32, #tpu.memory_space<smem>>
    %c38 = arith.constant 38 : index
    %46 = memref.load %arg4[%c38] : memref<96xf32, #tpu.memory_space<smem>>
    %c39 = arith.constant 39 : index
    %47 = memref.load %arg4[%c39] : memref<96xf32, #tpu.memory_space<smem>>
    %c40 = arith.constant 40 : index
    %48 = memref.load %arg4[%c40] : memref<96xf32, #tpu.memory_space<smem>>
    %c41 = arith.constant 41 : index
    %49 = memref.load %arg4[%c41] : memref<96xf32, #tpu.memory_space<smem>>
    %c42 = arith.constant 42 : index
    %50 = memref.load %arg4[%c42] : memref<96xf32, #tpu.memory_space<smem>>
    %c43 = arith.constant 43 : index
    %51 = memref.load %arg4[%c43] : memref<96xf32, #tpu.memory_space<smem>>
    %c44 = arith.constant 44 : index
    %52 = memref.load %arg4[%c44] : memref<96xf32, #tpu.memory_space<smem>>
    %c45 = arith.constant 45 : index
    %53 = memref.load %arg4[%c45] : memref<96xf32, #tpu.memory_space<smem>>
    %c46 = arith.constant 46 : index
    %54 = memref.load %arg4[%c46] : memref<96xf32, #tpu.memory_space<smem>>
    %c47 = arith.constant 47 : index
    %55 = memref.load %arg4[%c47] : memref<96xf32, #tpu.memory_space<smem>>
    %c48 = arith.constant 48 : index
    %56 = memref.load %arg4[%c48] : memref<96xf32, #tpu.memory_space<smem>>
    %c49 = arith.constant 49 : index
    %57 = memref.load %arg4[%c49] : memref<96xf32, #tpu.memory_space<smem>>
    %c50 = arith.constant 50 : index
    %58 = memref.load %arg4[%c50] : memref<96xf32, #tpu.memory_space<smem>>
    %c51 = arith.constant 51 : index
    %59 = memref.load %arg4[%c51] : memref<96xf32, #tpu.memory_space<smem>>
    %c52 = arith.constant 52 : index
    %60 = memref.load %arg4[%c52] : memref<96xf32, #tpu.memory_space<smem>>
    %c53 = arith.constant 53 : index
    %61 = memref.load %arg4[%c53] : memref<96xf32, #tpu.memory_space<smem>>
    %c54 = arith.constant 54 : index
    %62 = memref.load %arg4[%c54] : memref<96xf32, #tpu.memory_space<smem>>
    %c55 = arith.constant 55 : index
    %63 = memref.load %arg4[%c55] : memref<96xf32, #tpu.memory_space<smem>>
    %c56 = arith.constant 56 : index
    %64 = memref.load %arg4[%c56] : memref<96xf32, #tpu.memory_space<smem>>
    %c57 = arith.constant 57 : index
    %65 = memref.load %arg4[%c57] : memref<96xf32, #tpu.memory_space<smem>>
    %c58 = arith.constant 58 : index
    %66 = memref.load %arg4[%c58] : memref<96xf32, #tpu.memory_space<smem>>
    %c59 = arith.constant 59 : index
    %67 = memref.load %arg4[%c59] : memref<96xf32, #tpu.memory_space<smem>>
    %c60 = arith.constant 60 : index
    %68 = memref.load %arg4[%c60] : memref<96xf32, #tpu.memory_space<smem>>
    %c61 = arith.constant 61 : index
    %69 = memref.load %arg4[%c61] : memref<96xf32, #tpu.memory_space<smem>>
    %c62 = arith.constant 62 : index
    %70 = memref.load %arg4[%c62] : memref<96xf32, #tpu.memory_space<smem>>
    %c63 = arith.constant 63 : index
    %71 = memref.load %arg4[%c63] : memref<96xf32, #tpu.memory_space<smem>>
    %c64 = arith.constant 64 : index
    %72 = memref.load %arg4[%c64] : memref<96xf32, #tpu.memory_space<smem>>
    %c65 = arith.constant 65 : index
    %73 = memref.load %arg4[%c65] : memref<96xf32, #tpu.memory_space<smem>>
    %c66 = arith.constant 66 : index
    %74 = memref.load %arg4[%c66] : memref<96xf32, #tpu.memory_space<smem>>
    %c67 = arith.constant 67 : index
    %75 = memref.load %arg4[%c67] : memref<96xf32, #tpu.memory_space<smem>>
    %c68 = arith.constant 68 : index
    %76 = memref.load %arg4[%c68] : memref<96xf32, #tpu.memory_space<smem>>
    %c69 = arith.constant 69 : index
    %77 = memref.load %arg4[%c69] : memref<96xf32, #tpu.memory_space<smem>>
    %c70 = arith.constant 70 : index
    %78 = memref.load %arg4[%c70] : memref<96xf32, #tpu.memory_space<smem>>
    %c71 = arith.constant 71 : index
    %79 = memref.load %arg4[%c71] : memref<96xf32, #tpu.memory_space<smem>>
    %c72 = arith.constant 72 : index
    %80 = memref.load %arg4[%c72] : memref<96xf32, #tpu.memory_space<smem>>
    %c73 = arith.constant 73 : index
    %81 = memref.load %arg4[%c73] : memref<96xf32, #tpu.memory_space<smem>>
    %c74 = arith.constant 74 : index
    %82 = memref.load %arg4[%c74] : memref<96xf32, #tpu.memory_space<smem>>
    %c75 = arith.constant 75 : index
    %83 = memref.load %arg4[%c75] : memref<96xf32, #tpu.memory_space<smem>>
    %c76 = arith.constant 76 : index
    %84 = memref.load %arg4[%c76] : memref<96xf32, #tpu.memory_space<smem>>
    %c77 = arith.constant 77 : index
    %85 = memref.load %arg4[%c77] : memref<96xf32, #tpu.memory_space<smem>>
    %c78 = arith.constant 78 : index
    %86 = memref.load %arg4[%c78] : memref<96xf32, #tpu.memory_space<smem>>
    %c79 = arith.constant 79 : index
    %87 = memref.load %arg4[%c79] : memref<96xf32, #tpu.memory_space<smem>>
    %c80 = arith.constant 80 : index
    %88 = memref.load %arg4[%c80] : memref<96xf32, #tpu.memory_space<smem>>
    %c81 = arith.constant 81 : index
    %89 = memref.load %arg4[%c81] : memref<96xf32, #tpu.memory_space<smem>>
    %c82 = arith.constant 82 : index
    %90 = memref.load %arg4[%c82] : memref<96xf32, #tpu.memory_space<smem>>
    %c83 = arith.constant 83 : index
    %91 = memref.load %arg4[%c83] : memref<96xf32, #tpu.memory_space<smem>>
    %c84 = arith.constant 84 : index
    %92 = memref.load %arg4[%c84] : memref<96xf32, #tpu.memory_space<smem>>
    %c85 = arith.constant 85 : index
    %93 = memref.load %arg4[%c85] : memref<96xf32, #tpu.memory_space<smem>>
    %c86 = arith.constant 86 : index
    %94 = memref.load %arg4[%c86] : memref<96xf32, #tpu.memory_space<smem>>
    %c87 = arith.constant 87 : index
    %95 = memref.load %arg4[%c87] : memref<96xf32, #tpu.memory_space<smem>>
    %c88 = arith.constant 88 : index
    %96 = memref.load %arg4[%c88] : memref<96xf32, #tpu.memory_space<smem>>
    %c89 = arith.constant 89 : index
    %97 = memref.load %arg4[%c89] : memref<96xf32, #tpu.memory_space<smem>>
    %c90 = arith.constant 90 : index
    %98 = memref.load %arg4[%c90] : memref<96xf32, #tpu.memory_space<smem>>
    %c91 = arith.constant 91 : index
    %99 = memref.load %arg4[%c91] : memref<96xf32, #tpu.memory_space<smem>>
    %c92 = arith.constant 92 : index
    %100 = memref.load %arg4[%c92] : memref<96xf32, #tpu.memory_space<smem>>
    %c93 = arith.constant 93 : index
    %101 = memref.load %arg4[%c93] : memref<96xf32, #tpu.memory_space<smem>>
    %c94 = arith.constant 94 : index
    %102 = memref.load %arg4[%c94] : memref<96xf32, #tpu.memory_space<smem>>
    %c95 = arith.constant 95 : index
    %103 = memref.load %arg4[%c95] : memref<96xf32, #tpu.memory_space<smem>>
    %c0_6 = arith.constant 0 : index
    %104 = memref.load %arg5[%c0_6] : memref<8xf32, #tpu.memory_space<smem>>
    %c1_7 = arith.constant 1 : index
    %105 = memref.load %arg5[%c1_7] : memref<8xf32, #tpu.memory_space<smem>>
    %c2_8 = arith.constant 2 : index
    %106 = memref.load %arg5[%c2_8] : memref<8xf32, #tpu.memory_space<smem>>
    %c3_9 = arith.constant 3 : index
    %107 = memref.load %arg5[%c3_9] : memref<8xf32, #tpu.memory_space<smem>>
    %c4_10 = arith.constant 4 : index
    %108 = memref.load %arg5[%c4_10] : memref<8xf32, #tpu.memory_space<smem>>
    %c5_11 = arith.constant 5 : index
    %109 = memref.load %arg5[%c5_11] : memref<8xf32, #tpu.memory_space<smem>>
    %c6_12 = arith.constant 6 : index
    %110 = memref.load %arg5[%c6_12] : memref<8xf32, #tpu.memory_space<smem>>
    %c7_13 = arith.constant 7 : index
    %111 = memref.load %arg5[%c7_13] : memref<8xf32, #tpu.memory_space<smem>>
    %112 = vector.extract_strided_slice %7 {offsets = [0, 0], sizes = [14, 128], strides = [1, 1]} : vector<128x128xf32> to vector<14x128xf32>
    %113 = vector.broadcast %8 : f32 to vector<14x128xf32>
    %114 = arith.mulf %113, %112 : vector<14x128xf32>
    %115 = vector.broadcast %20 : f32 to vector<14x128xf32>
    %116 = arith.mulf %115, %112 : vector<14x128xf32>
    %117 = vector.broadcast %32 : f32 to vector<14x128xf32>
    %118 = arith.mulf %117, %112 : vector<14x128xf32>
    %119 = vector.broadcast %44 : f32 to vector<14x128xf32>
    %120 = arith.mulf %119, %112 : vector<14x128xf32>
    %121 = vector.broadcast %56 : f32 to vector<14x128xf32>
    %122 = arith.mulf %121, %112 : vector<14x128xf32>
    %123 = vector.broadcast %68 : f32 to vector<14x128xf32>
    %124 = arith.mulf %123, %112 : vector<14x128xf32>
    %125 = vector.broadcast %80 : f32 to vector<14x128xf32>
    %126 = arith.mulf %125, %112 : vector<14x128xf32>
    %127 = vector.broadcast %92 : f32 to vector<14x128xf32>
    %128 = arith.mulf %127, %112 : vector<14x128xf32>
    %129 = vector.extract_strided_slice %7 {offsets = [1, 0], sizes = [14, 128], strides = [1, 1]} : vector<128x128xf32> to vector<14x128xf32>
    %130 = vector.broadcast %9 : f32 to vector<14x128xf32>
    %131 = arith.mulf %130, %129 : vector<14x128xf32>
    %132 = arith.addf %114, %131 : vector<14x128xf32>
    %133 = vector.broadcast %21 : f32 to vector<14x128xf32>
    %134 = arith.mulf %133, %129 : vector<14x128xf32>
    %135 = arith.addf %116, %134 : vector<14x128xf32>
    %136 = vector.broadcast %33 : f32 to vector<14x128xf32>
    %137 = arith.mulf %136, %129 : vector<14x128xf32>
    %138 = arith.addf %118, %137 : vector<14x128xf32>
    %139 = vector.broadcast %45 : f32 to vector<14x128xf32>
    %140 = arith.mulf %139, %129 : vector<14x128xf32>
    %141 = arith.addf %120, %140 : vector<14x128xf32>
    %142 = vector.broadcast %57 : f32 to vector<14x128xf32>
    %143 = arith.mulf %142, %129 : vector<14x128xf32>
    %144 = arith.addf %122, %143 : vector<14x128xf32>
    %145 = vector.broadcast %69 : f32 to vector<14x128xf32>
    %146 = arith.mulf %145, %129 : vector<14x128xf32>
    %147 = arith.addf %124, %146 : vector<14x128xf32>
    %148 = vector.broadcast %81 : f32 to vector<14x128xf32>
    %149 = arith.mulf %148, %129 : vector<14x128xf32>
    %150 = arith.addf %126, %149 : vector<14x128xf32>
    %151 = vector.broadcast %93 : f32 to vector<14x128xf32>
    %152 = arith.mulf %151, %129 : vector<14x128xf32>
    %153 = arith.addf %128, %152 : vector<14x128xf32>
    %154 = vector.extract_strided_slice %7 {offsets = [2, 0], sizes = [14, 128], strides = [1, 1]} : vector<128x128xf32> to vector<14x128xf32>
    %155 = vector.broadcast %10 : f32 to vector<14x128xf32>
    %156 = arith.mulf %155, %154 : vector<14x128xf32>
    %157 = arith.addf %132, %156 : vector<14x128xf32>
    %158 = vector.broadcast %22 : f32 to vector<14x128xf32>
    %159 = arith.mulf %158, %154 : vector<14x128xf32>
    %160 = arith.addf %135, %159 : vector<14x128xf32>
    %161 = vector.broadcast %34 : f32 to vector<14x128xf32>
    %162 = arith.mulf %161, %154 : vector<14x128xf32>
    %163 = arith.addf %138, %162 : vector<14x128xf32>
    %164 = vector.broadcast %46 : f32 to vector<14x128xf32>
    %165 = arith.mulf %164, %154 : vector<14x128xf32>
    %166 = arith.addf %141, %165 : vector<14x128xf32>
    %167 = vector.broadcast %58 : f32 to vector<14x128xf32>
    %168 = arith.mulf %167, %154 : vector<14x128xf32>
    %169 = arith.addf %144, %168 : vector<14x128xf32>
    %170 = vector.broadcast %70 : f32 to vector<14x128xf32>
    %171 = arith.mulf %170, %154 : vector<14x128xf32>
    %172 = arith.addf %147, %171 : vector<14x128xf32>
    %173 = vector.broadcast %82 : f32 to vector<14x128xf32>
    %174 = arith.mulf %173, %154 : vector<14x128xf32>
    %175 = arith.addf %150, %174 : vector<14x128xf32>
    %176 = vector.broadcast %94 : f32 to vector<14x128xf32>
    %177 = arith.mulf %176, %154 : vector<14x128xf32>
    %178 = arith.addf %153, %177 : vector<14x128xf32>
    %179 = vector.extract_strided_slice %7 {offsets = [16, 0], sizes = [14, 128], strides = [1, 1]} : vector<128x128xf32> to vector<14x128xf32>
    %180 = vector.broadcast %11 : f32 to vector<14x128xf32>
    %181 = arith.mulf %180, %179 : vector<14x128xf32>
    %182 = arith.addf %157, %181 : vector<14x128xf32>
    %183 = vector.broadcast %23 : f32 to vector<14x128xf32>
    %184 = arith.mulf %183, %179 : vector<14x128xf32>
    %185 = arith.addf %160, %184 : vector<14x128xf32>
    %186 = vector.broadcast %35 : f32 to vector<14x128xf32>
    %187 = arith.mulf %186, %179 : vector<14x128xf32>
    %188 = arith.addf %163, %187 : vector<14x128xf32>
    %189 = vector.broadcast %47 : f32 to vector<14x128xf32>
    %190 = arith.mulf %189, %179 : vector<14x128xf32>
    %191 = arith.addf %166, %190 : vector<14x128xf32>
    %192 = vector.broadcast %59 : f32 to vector<14x128xf32>
    %193 = arith.mulf %192, %179 : vector<14x128xf32>
    %194 = arith.addf %169, %193 : vector<14x128xf32>
    %195 = vector.broadcast %71 : f32 to vector<14x128xf32>
    %196 = arith.mulf %195, %179 : vector<14x128xf32>
    %197 = arith.addf %172, %196 : vector<14x128xf32>
    %198 = vector.broadcast %83 : f32 to vector<14x128xf32>
    %199 = arith.mulf %198, %179 : vector<14x128xf32>
    %200 = arith.addf %175, %199 : vector<14x128xf32>
    %201 = vector.broadcast %95 : f32 to vector<14x128xf32>
    %202 = arith.mulf %201, %179 : vector<14x128xf32>
    %203 = arith.addf %178, %202 : vector<14x128xf32>
    %204 = vector.extract_strided_slice %7 {offsets = [17, 0], sizes = [14, 128], strides = [1, 1]} : vector<128x128xf32> to vector<14x128xf32>
    %205 = vector.broadcast %12 : f32 to vector<14x128xf32>
    %206 = arith.mulf %205, %204 : vector<14x128xf32>
    %207 = arith.addf %182, %206 : vector<14x128xf32>
    %208 = vector.broadcast %24 : f32 to vector<14x128xf32>
    %209 = arith.mulf %208, %204 : vector<14x128xf32>
    %210 = arith.addf %185, %209 : vector<14x128xf32>
    %211 = vector.broadcast %36 : f32 to vector<14x128xf32>
    %212 = arith.mulf %211, %204 : vector<14x128xf32>
    %213 = arith.addf %188, %212 : vector<14x128xf32>
    %214 = vector.broadcast %48 : f32 to vector<14x128xf32>
    %215 = arith.mulf %214, %204 : vector<14x128xf32>
    %216 = arith.addf %191, %215 : vector<14x128xf32>
    %217 = vector.broadcast %60 : f32 to vector<14x128xf32>
    %218 = arith.mulf %217, %204 : vector<14x128xf32>
    %219 = arith.addf %194, %218 : vector<14x128xf32>
    %220 = vector.broadcast %72 : f32 to vector<14x128xf32>
    %221 = arith.mulf %220, %204 : vector<14x128xf32>
    %222 = arith.addf %197, %221 : vector<14x128xf32>
    %223 = vector.broadcast %84 : f32 to vector<14x128xf32>
    %224 = arith.mulf %223, %204 : vector<14x128xf32>
    %225 = arith.addf %200, %224 : vector<14x128xf32>
    %226 = vector.broadcast %96 : f32 to vector<14x128xf32>
    %227 = arith.mulf %226, %204 : vector<14x128xf32>
    %228 = arith.addf %203, %227 : vector<14x128xf32>
    %229 = vector.extract_strided_slice %7 {offsets = [18, 0], sizes = [14, 128], strides = [1, 1]} : vector<128x128xf32> to vector<14x128xf32>
    %230 = vector.broadcast %13 : f32 to vector<14x128xf32>
    %231 = arith.mulf %230, %229 : vector<14x128xf32>
    %232 = arith.addf %207, %231 : vector<14x128xf32>
    %233 = vector.broadcast %25 : f32 to vector<14x128xf32>
    %234 = arith.mulf %233, %229 : vector<14x128xf32>
    %235 = arith.addf %210, %234 : vector<14x128xf32>
    %236 = vector.broadcast %37 : f32 to vector<14x128xf32>
    %237 = arith.mulf %236, %229 : vector<14x128xf32>
    %238 = arith.addf %213, %237 : vector<14x128xf32>
    %239 = vector.broadcast %49 : f32 to vector<14x128xf32>
    %240 = arith.mulf %239, %229 : vector<14x128xf32>
    %241 = arith.addf %216, %240 : vector<14x128xf32>
    %242 = vector.broadcast %61 : f32 to vector<14x128xf32>
    %243 = arith.mulf %242, %229 : vector<14x128xf32>
    %244 = arith.addf %219, %243 : vector<14x128xf32>
    %245 = vector.broadcast %73 : f32 to vector<14x128xf32>
    %246 = arith.mulf %245, %229 : vector<14x128xf32>
    %247 = arith.addf %222, %246 : vector<14x128xf32>
    %248 = vector.broadcast %85 : f32 to vector<14x128xf32>
    %249 = arith.mulf %248, %229 : vector<14x128xf32>
    %250 = arith.addf %225, %249 : vector<14x128xf32>
    %251 = vector.broadcast %97 : f32 to vector<14x128xf32>
    %252 = arith.mulf %251, %229 : vector<14x128xf32>
    %253 = arith.addf %228, %252 : vector<14x128xf32>
    %254 = vector.extract_strided_slice %7 {offsets = [32, 0], sizes = [14, 128], strides = [1, 1]} : vector<128x128xf32> to vector<14x128xf32>
    %255 = vector.broadcast %14 : f32 to vector<14x128xf32>
    %256 = arith.mulf %255, %254 : vector<14x128xf32>
    %257 = arith.addf %232, %256 : vector<14x128xf32>
    %258 = vector.broadcast %26 : f32 to vector<14x128xf32>
    %259 = arith.mulf %258, %254 : vector<14x128xf32>
    %260 = arith.addf %235, %259 : vector<14x128xf32>
    %261 = vector.broadcast %38 : f32 to vector<14x128xf32>
    %262 = arith.mulf %261, %254 : vector<14x128xf32>
    %263 = arith.addf %238, %262 : vector<14x128xf32>
    %264 = vector.broadcast %50 : f32 to vector<14x128xf32>
    %265 = arith.mulf %264, %254 : vector<14x128xf32>
    %266 = arith.addf %241, %265 : vector<14x128xf32>
    %267 = vector.broadcast %62 : f32 to vector<14x128xf32>
    %268 = arith.mulf %267, %254 : vector<14x128xf32>
    %269 = arith.addf %244, %268 : vector<14x128xf32>
    %270 = vector.broadcast %74 : f32 to vector<14x128xf32>
    %271 = arith.mulf %270, %254 : vector<14x128xf32>
    %272 = arith.addf %247, %271 : vector<14x128xf32>
    %273 = vector.broadcast %86 : f32 to vector<14x128xf32>
    %274 = arith.mulf %273, %254 : vector<14x128xf32>
    %275 = arith.addf %250, %274 : vector<14x128xf32>
    %276 = vector.broadcast %98 : f32 to vector<14x128xf32>
    %277 = arith.mulf %276, %254 : vector<14x128xf32>
    %278 = arith.addf %253, %277 : vector<14x128xf32>
    %279 = vector.extract_strided_slice %7 {offsets = [33, 0], sizes = [14, 128], strides = [1, 1]} : vector<128x128xf32> to vector<14x128xf32>
    %280 = vector.broadcast %15 : f32 to vector<14x128xf32>
    %281 = arith.mulf %280, %279 : vector<14x128xf32>
    %282 = arith.addf %257, %281 : vector<14x128xf32>
    %283 = vector.broadcast %27 : f32 to vector<14x128xf32>
    %284 = arith.mulf %283, %279 : vector<14x128xf32>
    %285 = arith.addf %260, %284 : vector<14x128xf32>
    %286 = vector.broadcast %39 : f32 to vector<14x128xf32>
    %287 = arith.mulf %286, %279 : vector<14x128xf32>
    %288 = arith.addf %263, %287 : vector<14x128xf32>
    %289 = vector.broadcast %51 : f32 to vector<14x128xf32>
    %290 = arith.mulf %289, %279 : vector<14x128xf32>
    %291 = arith.addf %266, %290 : vector<14x128xf32>
    %292 = vector.broadcast %63 : f32 to vector<14x128xf32>
    %293 = arith.mulf %292, %279 : vector<14x128xf32>
    %294 = arith.addf %269, %293 : vector<14x128xf32>
    %295 = vector.broadcast %75 : f32 to vector<14x128xf32>
    %296 = arith.mulf %295, %279 : vector<14x128xf32>
    %297 = arith.addf %272, %296 : vector<14x128xf32>
    %298 = vector.broadcast %87 : f32 to vector<14x128xf32>
    %299 = arith.mulf %298, %279 : vector<14x128xf32>
    %300 = arith.addf %275, %299 : vector<14x128xf32>
    %301 = vector.broadcast %99 : f32 to vector<14x128xf32>
    %302 = arith.mulf %301, %279 : vector<14x128xf32>
    %303 = arith.addf %278, %302 : vector<14x128xf32>
    %304 = vector.extract_strided_slice %7 {offsets = [34, 0], sizes = [14, 128], strides = [1, 1]} : vector<128x128xf32> to vector<14x128xf32>
    %305 = vector.broadcast %16 : f32 to vector<14x128xf32>
    %306 = arith.mulf %305, %304 : vector<14x128xf32>
    %307 = arith.addf %282, %306 : vector<14x128xf32>
    %308 = vector.broadcast %28 : f32 to vector<14x128xf32>
    %309 = arith.mulf %308, %304 : vector<14x128xf32>
    %310 = arith.addf %285, %309 : vector<14x128xf32>
    %311 = vector.broadcast %40 : f32 to vector<14x128xf32>
    %312 = arith.mulf %311, %304 : vector<14x128xf32>
    %313 = arith.addf %288, %312 : vector<14x128xf32>
    %314 = vector.broadcast %52 : f32 to vector<14x128xf32>
    %315 = arith.mulf %314, %304 : vector<14x128xf32>
    %316 = arith.addf %291, %315 : vector<14x128xf32>
    %317 = vector.broadcast %64 : f32 to vector<14x128xf32>
    %318 = arith.mulf %317, %304 : vector<14x128xf32>
    %319 = arith.addf %294, %318 : vector<14x128xf32>
    %320 = vector.broadcast %76 : f32 to vector<14x128xf32>
    %321 = arith.mulf %320, %304 : vector<14x128xf32>
    %322 = arith.addf %297, %321 : vector<14x128xf32>
    %323 = vector.broadcast %88 : f32 to vector<14x128xf32>
    %324 = arith.mulf %323, %304 : vector<14x128xf32>
    %325 = arith.addf %300, %324 : vector<14x128xf32>
    %326 = vector.broadcast %100 : f32 to vector<14x128xf32>
    %327 = arith.mulf %326, %304 : vector<14x128xf32>
    %328 = arith.addf %303, %327 : vector<14x128xf32>
    %329 = vector.extract_strided_slice %7 {offsets = [48, 0], sizes = [14, 128], strides = [1, 1]} : vector<128x128xf32> to vector<14x128xf32>
    %330 = vector.broadcast %17 : f32 to vector<14x128xf32>
    %331 = arith.mulf %330, %329 : vector<14x128xf32>
    %332 = arith.addf %307, %331 : vector<14x128xf32>
    %333 = vector.broadcast %29 : f32 to vector<14x128xf32>
    %334 = arith.mulf %333, %329 : vector<14x128xf32>
    %335 = arith.addf %310, %334 : vector<14x128xf32>
    %336 = vector.broadcast %41 : f32 to vector<14x128xf32>
    %337 = arith.mulf %336, %329 : vector<14x128xf32>
    %338 = arith.addf %313, %337 : vector<14x128xf32>
    %339 = vector.broadcast %53 : f32 to vector<14x128xf32>
    %340 = arith.mulf %339, %329 : vector<14x128xf32>
    %341 = arith.addf %316, %340 : vector<14x128xf32>
    %342 = vector.broadcast %65 : f32 to vector<14x128xf32>
    %343 = arith.mulf %342, %329 : vector<14x128xf32>
    %344 = arith.addf %319, %343 : vector<14x128xf32>
    %345 = vector.broadcast %77 : f32 to vector<14x128xf32>
    %346 = arith.mulf %345, %329 : vector<14x128xf32>
    %347 = arith.addf %322, %346 : vector<14x128xf32>
    %348 = vector.broadcast %89 : f32 to vector<14x128xf32>
    %349 = arith.mulf %348, %329 : vector<14x128xf32>
    %350 = arith.addf %325, %349 : vector<14x128xf32>
    %351 = vector.broadcast %101 : f32 to vector<14x128xf32>
    %352 = arith.mulf %351, %329 : vector<14x128xf32>
    %353 = arith.addf %328, %352 : vector<14x128xf32>
    %354 = vector.extract_strided_slice %7 {offsets = [49, 0], sizes = [14, 128], strides = [1, 1]} : vector<128x128xf32> to vector<14x128xf32>
    %355 = vector.broadcast %18 : f32 to vector<14x128xf32>
    %356 = arith.mulf %355, %354 : vector<14x128xf32>
    %357 = arith.addf %332, %356 : vector<14x128xf32>
    %358 = vector.broadcast %30 : f32 to vector<14x128xf32>
    %359 = arith.mulf %358, %354 : vector<14x128xf32>
    %360 = arith.addf %335, %359 : vector<14x128xf32>
    %361 = vector.broadcast %42 : f32 to vector<14x128xf32>
    %362 = arith.mulf %361, %354 : vector<14x128xf32>
    %363 = arith.addf %338, %362 : vector<14x128xf32>
    %364 = vector.broadcast %54 : f32 to vector<14x128xf32>
    %365 = arith.mulf %364, %354 : vector<14x128xf32>
    %366 = arith.addf %341, %365 : vector<14x128xf32>
    %367 = vector.broadcast %66 : f32 to vector<14x128xf32>
    %368 = arith.mulf %367, %354 : vector<14x128xf32>
    %369 = arith.addf %344, %368 : vector<14x128xf32>
    %370 = vector.broadcast %78 : f32 to vector<14x128xf32>
    %371 = arith.mulf %370, %354 : vector<14x128xf32>
    %372 = arith.addf %347, %371 : vector<14x128xf32>
    %373 = vector.broadcast %90 : f32 to vector<14x128xf32>
    %374 = arith.mulf %373, %354 : vector<14x128xf32>
    %375 = arith.addf %350, %374 : vector<14x128xf32>
    %376 = vector.broadcast %102 : f32 to vector<14x128xf32>
    %377 = arith.mulf %376, %354 : vector<14x128xf32>
    %378 = arith.addf %353, %377 : vector<14x128xf32>
    %379 = vector.extract_strided_slice %7 {offsets = [50, 0], sizes = [14, 128], strides = [1, 1]} : vector<128x128xf32> to vector<14x128xf32>
    %380 = vector.broadcast %19 : f32 to vector<14x128xf32>
    %381 = arith.mulf %380, %379 : vector<14x128xf32>
    %382 = arith.addf %357, %381 : vector<14x128xf32>
    %383 = vector.broadcast %31 : f32 to vector<14x128xf32>
    %384 = arith.mulf %383, %379 : vector<14x128xf32>
    %385 = arith.addf %360, %384 : vector<14x128xf32>
    %386 = vector.broadcast %43 : f32 to vector<14x128xf32>
    %387 = arith.mulf %386, %379 : vector<14x128xf32>
    %388 = arith.addf %363, %387 : vector<14x128xf32>
    %389 = vector.broadcast %55 : f32 to vector<14x128xf32>
    %390 = arith.mulf %389, %379 : vector<14x128xf32>
    %391 = arith.addf %366, %390 : vector<14x128xf32>
    %392 = vector.broadcast %67 : f32 to vector<14x128xf32>
    %393 = arith.mulf %392, %379 : vector<14x128xf32>
    %394 = arith.addf %369, %393 : vector<14x128xf32>
    %395 = vector.broadcast %79 : f32 to vector<14x128xf32>
    %396 = arith.mulf %395, %379 : vector<14x128xf32>
    %397 = arith.addf %372, %396 : vector<14x128xf32>
    %398 = vector.broadcast %91 : f32 to vector<14x128xf32>
    %399 = arith.mulf %398, %379 : vector<14x128xf32>
    %400 = arith.addf %375, %399 : vector<14x128xf32>
    %401 = vector.broadcast %103 : f32 to vector<14x128xf32>
    %402 = arith.mulf %401, %379 : vector<14x128xf32>
    %403 = arith.addf %378, %402 : vector<14x128xf32>
    %404 = vector.broadcast %104 : f32 to vector<14x128xf32>
    %405 = arith.addf %382, %404 : vector<14x128xf32>
    %406 = arith.negf %405 : vector<14x128xf32>
    %407 = math.exp %406 : vector<14x128xf32>
    %cst_14 = arith.constant 1.000000e+00 : f32
    %408 = vector.broadcast %cst_14 : f32 to vector<14x128xf32>
    %409 = arith.addf %408, %407 : vector<14x128xf32>
    %410 = arith.divf %408, %409 : vector<14x128xf32>
    %411 = vector.broadcast %105 : f32 to vector<14x128xf32>
    %412 = arith.addf %385, %411 : vector<14x128xf32>
    %413 = arith.negf %412 : vector<14x128xf32>
    %414 = math.exp %413 : vector<14x128xf32>
    %cst_15 = arith.constant 1.000000e+00 : f32
    %415 = vector.broadcast %cst_15 : f32 to vector<14x128xf32>
    %416 = arith.addf %415, %414 : vector<14x128xf32>
    %417 = arith.divf %415, %416 : vector<14x128xf32>
    %418 = vector.broadcast %106 : f32 to vector<14x128xf32>
    %419 = arith.addf %388, %418 : vector<14x128xf32>
    %420 = arith.negf %419 : vector<14x128xf32>
    %421 = math.exp %420 : vector<14x128xf32>
    %cst_16 = arith.constant 1.000000e+00 : f32
    %422 = vector.broadcast %cst_16 : f32 to vector<14x128xf32>
    %423 = arith.addf %422, %421 : vector<14x128xf32>
    %424 = arith.divf %422, %423 : vector<14x128xf32>
    %425 = vector.broadcast %107 : f32 to vector<14x128xf32>
    %426 = arith.addf %391, %425 : vector<14x128xf32>
    %427 = arith.negf %426 : vector<14x128xf32>
    %428 = math.exp %427 : vector<14x128xf32>
    %cst_17 = arith.constant 1.000000e+00 : f32
    %429 = vector.broadcast %cst_17 : f32 to vector<14x128xf32>
    %430 = arith.addf %429, %428 : vector<14x128xf32>
    %431 = arith.divf %429, %430 : vector<14x128xf32>
    %432 = vector.broadcast %108 : f32 to vector<14x128xf32>
    %433 = arith.addf %394, %432 : vector<14x128xf32>
    %434 = arith.negf %433 : vector<14x128xf32>
    %435 = math.exp %434 : vector<14x128xf32>
    %cst_18 = arith.constant 1.000000e+00 : f32
    %436 = vector.broadcast %cst_18 : f32 to vector<14x128xf32>
    %437 = arith.addf %436, %435 : vector<14x128xf32>
    %438 = arith.divf %436, %437 : vector<14x128xf32>
    %439 = vector.broadcast %109 : f32 to vector<14x128xf32>
    %440 = arith.addf %397, %439 : vector<14x128xf32>
    %441 = arith.negf %440 : vector<14x128xf32>
    %442 = math.exp %441 : vector<14x128xf32>
    %cst_19 = arith.constant 1.000000e+00 : f32
    %443 = vector.broadcast %cst_19 : f32 to vector<14x128xf32>
    %444 = arith.addf %443, %442 : vector<14x128xf32>
    %445 = arith.divf %443, %444 : vector<14x128xf32>
    %446 = vector.broadcast %110 : f32 to vector<14x128xf32>
    %447 = arith.addf %400, %446 : vector<14x128xf32>
    %448 = arith.negf %447 : vector<14x128xf32>
    %449 = math.exp %448 : vector<14x128xf32>
    %cst_20 = arith.constant 1.000000e+00 : f32
    %450 = vector.broadcast %cst_20 : f32 to vector<14x128xf32>
    %451 = arith.addf %450, %449 : vector<14x128xf32>
    %452 = arith.divf %450, %451 : vector<14x128xf32>
    %453 = vector.broadcast %111 : f32 to vector<14x128xf32>
    %454 = arith.addf %403, %453 : vector<14x128xf32>
    %455 = arith.negf %454 : vector<14x128xf32>
    %456 = math.exp %455 : vector<14x128xf32>
    %cst_21 = arith.constant 1.000000e+00 : f32
    %457 = vector.broadcast %cst_21 : f32 to vector<14x128xf32>
    %458 = arith.addf %457, %456 : vector<14x128xf32>
    %459 = arith.divf %457, %458 : vector<14x128xf32>
    %460 = tpu.concatenate %410, %417, %424, %431, %438, %445, %452, %459 in 0 : vector<14x128xf32>, vector<14x128xf32>, vector<14x128xf32>, vector<14x128xf32>, vector<14x128xf32>, vector<14x128xf32>, vector<14x128xf32>, vector<14x128xf32> -> vector<112x128xf32>
    %461 = vector.extract_strided_slice %7 {offsets = [64, 0], sizes = [14, 128], strides = [1, 1]} : vector<128x128xf32> to vector<14x128xf32>
    %462 = vector.broadcast %8 : f32 to vector<14x128xf32>
    %463 = arith.mulf %462, %461 : vector<14x128xf32>
    %464 = vector.broadcast %20 : f32 to vector<14x128xf32>
    %465 = arith.mulf %464, %461 : vector<14x128xf32>
    %466 = vector.broadcast %32 : f32 to vector<14x128xf32>
    %467 = arith.mulf %466, %461 : vector<14x128xf32>
    %468 = vector.broadcast %44 : f32 to vector<14x128xf32>
    %469 = arith.mulf %468, %461 : vector<14x128xf32>
    %470 = vector.broadcast %56 : f32 to vector<14x128xf32>
    %471 = arith.mulf %470, %461 : vector<14x128xf32>
    %472 = vector.broadcast %68 : f32 to vector<14x128xf32>
    %473 = arith.mulf %472, %461 : vector<14x128xf32>
    %474 = vector.broadcast %80 : f32 to vector<14x128xf32>
    %475 = arith.mulf %474, %461 : vector<14x128xf32>
    %476 = vector.broadcast %92 : f32 to vector<14x128xf32>
    %477 = arith.mulf %476, %461 : vector<14x128xf32>
    %478 = vector.extract_strided_slice %7 {offsets = [65, 0], sizes = [14, 128], strides = [1, 1]} : vector<128x128xf32> to vector<14x128xf32>
    %479 = vector.broadcast %9 : f32 to vector<14x128xf32>
    %480 = arith.mulf %479, %478 : vector<14x128xf32>
    %481 = arith.addf %463, %480 : vector<14x128xf32>
    %482 = vector.broadcast %21 : f32 to vector<14x128xf32>
    %483 = arith.mulf %482, %478 : vector<14x128xf32>
    %484 = arith.addf %465, %483 : vector<14x128xf32>
    %485 = vector.broadcast %33 : f32 to vector<14x128xf32>
    %486 = arith.mulf %485, %478 : vector<14x128xf32>
    %487 = arith.addf %467, %486 : vector<14x128xf32>
    %488 = vector.broadcast %45 : f32 to vector<14x128xf32>
    %489 = arith.mulf %488, %478 : vector<14x128xf32>
    %490 = arith.addf %469, %489 : vector<14x128xf32>
    %491 = vector.broadcast %57 : f32 to vector<14x128xf32>
    %492 = arith.mulf %491, %478 : vector<14x128xf32>
    %493 = arith.addf %471, %492 : vector<14x128xf32>
    %494 = vector.broadcast %69 : f32 to vector<14x128xf32>
    %495 = arith.mulf %494, %478 : vector<14x128xf32>
    %496 = arith.addf %473, %495 : vector<14x128xf32>
    %497 = vector.broadcast %81 : f32 to vector<14x128xf32>
    %498 = arith.mulf %497, %478 : vector<14x128xf32>
    %499 = arith.addf %475, %498 : vector<14x128xf32>
    %500 = vector.broadcast %93 : f32 to vector<14x128xf32>
    %501 = arith.mulf %500, %478 : vector<14x128xf32>
    %502 = arith.addf %477, %501 : vector<14x128xf32>
    %503 = vector.extract_strided_slice %7 {offsets = [66, 0], sizes = [14, 128], strides = [1, 1]} : vector<128x128xf32> to vector<14x128xf32>
    %504 = vector.broadcast %10 : f32 to vector<14x128xf32>
    %505 = arith.mulf %504, %503 : vector<14x128xf32>
    %506 = arith.addf %481, %505 : vector<14x128xf32>
    %507 = vector.broadcast %22 : f32 to vector<14x128xf32>
    %508 = arith.mulf %507, %503 : vector<14x128xf32>
    %509 = arith.addf %484, %508 : vector<14x128xf32>
    %510 = vector.broadcast %34 : f32 to vector<14x128xf32>
    %511 = arith.mulf %510, %503 : vector<14x128xf32>
    %512 = arith.addf %487, %511 : vector<14x128xf32>
    %513 = vector.broadcast %46 : f32 to vector<14x128xf32>
    %514 = arith.mulf %513, %503 : vector<14x128xf32>
    %515 = arith.addf %490, %514 : vector<14x128xf32>
    %516 = vector.broadcast %58 : f32 to vector<14x128xf32>
    %517 = arith.mulf %516, %503 : vector<14x128xf32>
    %518 = arith.addf %493, %517 : vector<14x128xf32>
    %519 = vector.broadcast %70 : f32 to vector<14x128xf32>
    %520 = arith.mulf %519, %503 : vector<14x128xf32>
    %521 = arith.addf %496, %520 : vector<14x128xf32>
    %522 = vector.broadcast %82 : f32 to vector<14x128xf32>
    %523 = arith.mulf %522, %503 : vector<14x128xf32>
    %524 = arith.addf %499, %523 : vector<14x128xf32>
    %525 = vector.broadcast %94 : f32 to vector<14x128xf32>
    %526 = arith.mulf %525, %503 : vector<14x128xf32>
    %527 = arith.addf %502, %526 : vector<14x128xf32>
    %528 = vector.extract_strided_slice %7 {offsets = [80, 0], sizes = [14, 128], strides = [1, 1]} : vector<128x128xf32> to vector<14x128xf32>
    %529 = vector.broadcast %11 : f32 to vector<14x128xf32>
    %530 = arith.mulf %529, %528 : vector<14x128xf32>
    %531 = arith.addf %506, %530 : vector<14x128xf32>
    %532 = vector.broadcast %23 : f32 to vector<14x128xf32>
    %533 = arith.mulf %532, %528 : vector<14x128xf32>
    %534 = arith.addf %509, %533 : vector<14x128xf32>
    %535 = vector.broadcast %35 : f32 to vector<14x128xf32>
    %536 = arith.mulf %535, %528 : vector<14x128xf32>
    %537 = arith.addf %512, %536 : vector<14x128xf32>
    %538 = vector.broadcast %47 : f32 to vector<14x128xf32>
    %539 = arith.mulf %538, %528 : vector<14x128xf32>
    %540 = arith.addf %515, %539 : vector<14x128xf32>
    %541 = vector.broadcast %59 : f32 to vector<14x128xf32>
    %542 = arith.mulf %541, %528 : vector<14x128xf32>
    %543 = arith.addf %518, %542 : vector<14x128xf32>
    %544 = vector.broadcast %71 : f32 to vector<14x128xf32>
    %545 = arith.mulf %544, %528 : vector<14x128xf32>
    %546 = arith.addf %521, %545 : vector<14x128xf32>
    %547 = vector.broadcast %83 : f32 to vector<14x128xf32>
    %548 = arith.mulf %547, %528 : vector<14x128xf32>
    %549 = arith.addf %524, %548 : vector<14x128xf32>
    %550 = vector.broadcast %95 : f32 to vector<14x128xf32>
    %551 = arith.mulf %550, %528 : vector<14x128xf32>
    %552 = arith.addf %527, %551 : vector<14x128xf32>
    %553 = vector.extract_strided_slice %7 {offsets = [81, 0], sizes = [14, 128], strides = [1, 1]} : vector<128x128xf32> to vector<14x128xf32>
    %554 = vector.broadcast %12 : f32 to vector<14x128xf32>
    %555 = arith.mulf %554, %553 : vector<14x128xf32>
    %556 = arith.addf %531, %555 : vector<14x128xf32>
    %557 = vector.broadcast %24 : f32 to vector<14x128xf32>
    %558 = arith.mulf %557, %553 : vector<14x128xf32>
    %559 = arith.addf %534, %558 : vector<14x128xf32>
    %560 = vector.broadcast %36 : f32 to vector<14x128xf32>
    %561 = arith.mulf %560, %553 : vector<14x128xf32>
    %562 = arith.addf %537, %561 : vector<14x128xf32>
    %563 = vector.broadcast %48 : f32 to vector<14x128xf32>
    %564 = arith.mulf %563, %553 : vector<14x128xf32>
    %565 = arith.addf %540, %564 : vector<14x128xf32>
    %566 = vector.broadcast %60 : f32 to vector<14x128xf32>
    %567 = arith.mulf %566, %553 : vector<14x128xf32>
    %568 = arith.addf %543, %567 : vector<14x128xf32>
    %569 = vector.broadcast %72 : f32 to vector<14x128xf32>
    %570 = arith.mulf %569, %553 : vector<14x128xf32>
    %571 = arith.addf %546, %570 : vector<14x128xf32>
    %572 = vector.broadcast %84 : f32 to vector<14x128xf32>
    %573 = arith.mulf %572, %553 : vector<14x128xf32>
    %574 = arith.addf %549, %573 : vector<14x128xf32>
    %575 = vector.broadcast %96 : f32 to vector<14x128xf32>
    %576 = arith.mulf %575, %553 : vector<14x128xf32>
    %577 = arith.addf %552, %576 : vector<14x128xf32>
    %578 = vector.extract_strided_slice %7 {offsets = [82, 0], sizes = [14, 128], strides = [1, 1]} : vector<128x128xf32> to vector<14x128xf32>
    %579 = vector.broadcast %13 : f32 to vector<14x128xf32>
    %580 = arith.mulf %579, %578 : vector<14x128xf32>
    %581 = arith.addf %556, %580 : vector<14x128xf32>
    %582 = vector.broadcast %25 : f32 to vector<14x128xf32>
    %583 = arith.mulf %582, %578 : vector<14x128xf32>
    %584 = arith.addf %559, %583 : vector<14x128xf32>
    %585 = vector.broadcast %37 : f32 to vector<14x128xf32>
    %586 = arith.mulf %585, %578 : vector<14x128xf32>
    %587 = arith.addf %562, %586 : vector<14x128xf32>
    %588 = vector.broadcast %49 : f32 to vector<14x128xf32>
    %589 = arith.mulf %588, %578 : vector<14x128xf32>
    %590 = arith.addf %565, %589 : vector<14x128xf32>
    %591 = vector.broadcast %61 : f32 to vector<14x128xf32>
    %592 = arith.mulf %591, %578 : vector<14x128xf32>
    %593 = arith.addf %568, %592 : vector<14x128xf32>
    %594 = vector.broadcast %73 : f32 to vector<14x128xf32>
    %595 = arith.mulf %594, %578 : vector<14x128xf32>
    %596 = arith.addf %571, %595 : vector<14x128xf32>
    %597 = vector.broadcast %85 : f32 to vector<14x128xf32>
    %598 = arith.mulf %597, %578 : vector<14x128xf32>
    %599 = arith.addf %574, %598 : vector<14x128xf32>
    %600 = vector.broadcast %97 : f32 to vector<14x128xf32>
    %601 = arith.mulf %600, %578 : vector<14x128xf32>
    %602 = arith.addf %577, %601 : vector<14x128xf32>
    %603 = vector.extract_strided_slice %7 {offsets = [96, 0], sizes = [14, 128], strides = [1, 1]} : vector<128x128xf32> to vector<14x128xf32>
    %604 = vector.broadcast %14 : f32 to vector<14x128xf32>
    %605 = arith.mulf %604, %603 : vector<14x128xf32>
    %606 = arith.addf %581, %605 : vector<14x128xf32>
    %607 = vector.broadcast %26 : f32 to vector<14x128xf32>
    %608 = arith.mulf %607, %603 : vector<14x128xf32>
    %609 = arith.addf %584, %608 : vector<14x128xf32>
    %610 = vector.broadcast %38 : f32 to vector<14x128xf32>
    %611 = arith.mulf %610, %603 : vector<14x128xf32>
    %612 = arith.addf %587, %611 : vector<14x128xf32>
    %613 = vector.broadcast %50 : f32 to vector<14x128xf32>
    %614 = arith.mulf %613, %603 : vector<14x128xf32>
    %615 = arith.addf %590, %614 : vector<14x128xf32>
    %616 = vector.broadcast %62 : f32 to vector<14x128xf32>
    %617 = arith.mulf %616, %603 : vector<14x128xf32>
    %618 = arith.addf %593, %617 : vector<14x128xf32>
    %619 = vector.broadcast %74 : f32 to vector<14x128xf32>
    %620 = arith.mulf %619, %603 : vector<14x128xf32>
    %621 = arith.addf %596, %620 : vector<14x128xf32>
    %622 = vector.broadcast %86 : f32 to vector<14x128xf32>
    %623 = arith.mulf %622, %603 : vector<14x128xf32>
    %624 = arith.addf %599, %623 : vector<14x128xf32>
    %625 = vector.broadcast %98 : f32 to vector<14x128xf32>
    %626 = arith.mulf %625, %603 : vector<14x128xf32>
    %627 = arith.addf %602, %626 : vector<14x128xf32>
    %628 = vector.extract_strided_slice %7 {offsets = [97, 0], sizes = [14, 128], strides = [1, 1]} : vector<128x128xf32> to vector<14x128xf32>
    %629 = vector.broadcast %15 : f32 to vector<14x128xf32>
    %630 = arith.mulf %629, %628 : vector<14x128xf32>
    %631 = arith.addf %606, %630 : vector<14x128xf32>
    %632 = vector.broadcast %27 : f32 to vector<14x128xf32>
    %633 = arith.mulf %632, %628 : vector<14x128xf32>
    %634 = arith.addf %609, %633 : vector<14x128xf32>
    %635 = vector.broadcast %39 : f32 to vector<14x128xf32>
    %636 = arith.mulf %635, %628 : vector<14x128xf32>
    %637 = arith.addf %612, %636 : vector<14x128xf32>
    %638 = vector.broadcast %51 : f32 to vector<14x128xf32>
    %639 = arith.mulf %638, %628 : vector<14x128xf32>
    %640 = arith.addf %615, %639 : vector<14x128xf32>
    %641 = vector.broadcast %63 : f32 to vector<14x128xf32>
    %642 = arith.mulf %641, %628 : vector<14x128xf32>
    %643 = arith.addf %618, %642 : vector<14x128xf32>
    %644 = vector.broadcast %75 : f32 to vector<14x128xf32>
    %645 = arith.mulf %644, %628 : vector<14x128xf32>
    %646 = arith.addf %621, %645 : vector<14x128xf32>
    %647 = vector.broadcast %87 : f32 to vector<14x128xf32>
    %648 = arith.mulf %647, %628 : vector<14x128xf32>
    %649 = arith.addf %624, %648 : vector<14x128xf32>
    %650 = vector.broadcast %99 : f32 to vector<14x128xf32>
    %651 = arith.mulf %650, %628 : vector<14x128xf32>
    %652 = arith.addf %627, %651 : vector<14x128xf32>
    %653 = vector.extract_strided_slice %7 {offsets = [98, 0], sizes = [14, 128], strides = [1, 1]} : vector<128x128xf32> to vector<14x128xf32>
    %654 = vector.broadcast %16 : f32 to vector<14x128xf32>
    %655 = arith.mulf %654, %653 : vector<14x128xf32>
    %656 = arith.addf %631, %655 : vector<14x128xf32>
    %657 = vector.broadcast %28 : f32 to vector<14x128xf32>
    %658 = arith.mulf %657, %653 : vector<14x128xf32>
    %659 = arith.addf %634, %658 : vector<14x128xf32>
    %660 = vector.broadcast %40 : f32 to vector<14x128xf32>
    %661 = arith.mulf %660, %653 : vector<14x128xf32>
    %662 = arith.addf %637, %661 : vector<14x128xf32>
    %663 = vector.broadcast %52 : f32 to vector<14x128xf32>
    %664 = arith.mulf %663, %653 : vector<14x128xf32>
    %665 = arith.addf %640, %664 : vector<14x128xf32>
    %666 = vector.broadcast %64 : f32 to vector<14x128xf32>
    %667 = arith.mulf %666, %653 : vector<14x128xf32>
    %668 = arith.addf %643, %667 : vector<14x128xf32>
    %669 = vector.broadcast %76 : f32 to vector<14x128xf32>
    %670 = arith.mulf %669, %653 : vector<14x128xf32>
    %671 = arith.addf %646, %670 : vector<14x128xf32>
    %672 = vector.broadcast %88 : f32 to vector<14x128xf32>
    %673 = arith.mulf %672, %653 : vector<14x128xf32>
    %674 = arith.addf %649, %673 : vector<14x128xf32>
    %675 = vector.broadcast %100 : f32 to vector<14x128xf32>
    %676 = arith.mulf %675, %653 : vector<14x128xf32>
    %677 = arith.addf %652, %676 : vector<14x128xf32>
    %678 = vector.extract_strided_slice %7 {offsets = [112, 0], sizes = [14, 128], strides = [1, 1]} : vector<128x128xf32> to vector<14x128xf32>
    %679 = vector.broadcast %17 : f32 to vector<14x128xf32>
    %680 = arith.mulf %679, %678 : vector<14x128xf32>
    %681 = arith.addf %656, %680 : vector<14x128xf32>
    %682 = vector.broadcast %29 : f32 to vector<14x128xf32>
    %683 = arith.mulf %682, %678 : vector<14x128xf32>
    %684 = arith.addf %659, %683 : vector<14x128xf32>
    %685 = vector.broadcast %41 : f32 to vector<14x128xf32>
    %686 = arith.mulf %685, %678 : vector<14x128xf32>
    %687 = arith.addf %662, %686 : vector<14x128xf32>
    %688 = vector.broadcast %53 : f32 to vector<14x128xf32>
    %689 = arith.mulf %688, %678 : vector<14x128xf32>
    %690 = arith.addf %665, %689 : vector<14x128xf32>
    %691 = vector.broadcast %65 : f32 to vector<14x128xf32>
    %692 = arith.mulf %691, %678 : vector<14x128xf32>
    %693 = arith.addf %668, %692 : vector<14x128xf32>
    %694 = vector.broadcast %77 : f32 to vector<14x128xf32>
    %695 = arith.mulf %694, %678 : vector<14x128xf32>
    %696 = arith.addf %671, %695 : vector<14x128xf32>
    %697 = vector.broadcast %89 : f32 to vector<14x128xf32>
    %698 = arith.mulf %697, %678 : vector<14x128xf32>
    %699 = arith.addf %674, %698 : vector<14x128xf32>
    %700 = vector.broadcast %101 : f32 to vector<14x128xf32>
    %701 = arith.mulf %700, %678 : vector<14x128xf32>
    %702 = arith.addf %677, %701 : vector<14x128xf32>
    %703 = vector.extract_strided_slice %7 {offsets = [113, 0], sizes = [14, 128], strides = [1, 1]} : vector<128x128xf32> to vector<14x128xf32>
    %704 = vector.broadcast %18 : f32 to vector<14x128xf32>
    %705 = arith.mulf %704, %703 : vector<14x128xf32>
    %706 = arith.addf %681, %705 : vector<14x128xf32>
    %707 = vector.broadcast %30 : f32 to vector<14x128xf32>
    %708 = arith.mulf %707, %703 : vector<14x128xf32>
    %709 = arith.addf %684, %708 : vector<14x128xf32>
    %710 = vector.broadcast %42 : f32 to vector<14x128xf32>
    %711 = arith.mulf %710, %703 : vector<14x128xf32>
    %712 = arith.addf %687, %711 : vector<14x128xf32>
    %713 = vector.broadcast %54 : f32 to vector<14x128xf32>
    %714 = arith.mulf %713, %703 : vector<14x128xf32>
    %715 = arith.addf %690, %714 : vector<14x128xf32>
    %716 = vector.broadcast %66 : f32 to vector<14x128xf32>
    %717 = arith.mulf %716, %703 : vector<14x128xf32>
    %718 = arith.addf %693, %717 : vector<14x128xf32>
    %719 = vector.broadcast %78 : f32 to vector<14x128xf32>
    %720 = arith.mulf %719, %703 : vector<14x128xf32>
    %721 = arith.addf %696, %720 : vector<14x128xf32>
    %722 = vector.broadcast %90 : f32 to vector<14x128xf32>
    %723 = arith.mulf %722, %703 : vector<14x128xf32>
    %724 = arith.addf %699, %723 : vector<14x128xf32>
    %725 = vector.broadcast %102 : f32 to vector<14x128xf32>
    %726 = arith.mulf %725, %703 : vector<14x128xf32>
    %727 = arith.addf %702, %726 : vector<14x128xf32>
    %728 = vector.extract_strided_slice %7 {offsets = [114, 0], sizes = [14, 128], strides = [1, 1]} : vector<128x128xf32> to vector<14x128xf32>
    %729 = vector.broadcast %19 : f32 to vector<14x128xf32>
    %730 = arith.mulf %729, %728 : vector<14x128xf32>
    %731 = arith.addf %706, %730 : vector<14x128xf32>
    %732 = vector.broadcast %31 : f32 to vector<14x128xf32>
    %733 = arith.mulf %732, %728 : vector<14x128xf32>
    %734 = arith.addf %709, %733 : vector<14x128xf32>
    %735 = vector.broadcast %43 : f32 to vector<14x128xf32>
    %736 = arith.mulf %735, %728 : vector<14x128xf32>
    %737 = arith.addf %712, %736 : vector<14x128xf32>
    %738 = vector.broadcast %55 : f32 to vector<14x128xf32>
    %739 = arith.mulf %738, %728 : vector<14x128xf32>
    %740 = arith.addf %715, %739 : vector<14x128xf32>
    %741 = vector.broadcast %67 : f32 to vector<14x128xf32>
    %742 = arith.mulf %741, %728 : vector<14x128xf32>
    %743 = arith.addf %718, %742 : vector<14x128xf32>
    %744 = vector.broadcast %79 : f32 to vector<14x128xf32>
    %745 = arith.mulf %744, %728 : vector<14x128xf32>
    %746 = arith.addf %721, %745 : vector<14x128xf32>
    %747 = vector.broadcast %91 : f32 to vector<14x128xf32>
    %748 = arith.mulf %747, %728 : vector<14x128xf32>
    %749 = arith.addf %724, %748 : vector<14x128xf32>
    %750 = vector.broadcast %103 : f32 to vector<14x128xf32>
    %751 = arith.mulf %750, %728 : vector<14x128xf32>
    %752 = arith.addf %727, %751 : vector<14x128xf32>
    %753 = vector.broadcast %104 : f32 to vector<14x128xf32>
    %754 = arith.addf %731, %753 : vector<14x128xf32>
    %755 = arith.negf %754 : vector<14x128xf32>
    %756 = math.exp %755 : vector<14x128xf32>
    %cst_22 = arith.constant 1.000000e+00 : f32
    %757 = vector.broadcast %cst_22 : f32 to vector<14x128xf32>
    %758 = arith.addf %757, %756 : vector<14x128xf32>
    %759 = arith.divf %757, %758 : vector<14x128xf32>
    %760 = vector.broadcast %105 : f32 to vector<14x128xf32>
    %761 = arith.addf %734, %760 : vector<14x128xf32>
    %762 = arith.negf %761 : vector<14x128xf32>
    %763 = math.exp %762 : vector<14x128xf32>
    %cst_23 = arith.constant 1.000000e+00 : f32
    %764 = vector.broadcast %cst_23 : f32 to vector<14x128xf32>
    %765 = arith.addf %764, %763 : vector<14x128xf32>
    %766 = arith.divf %764, %765 : vector<14x128xf32>
    %767 = vector.broadcast %106 : f32 to vector<14x128xf32>
    %768 = arith.addf %737, %767 : vector<14x128xf32>
    %769 = arith.negf %768 : vector<14x128xf32>
    %770 = math.exp %769 : vector<14x128xf32>
    %cst_24 = arith.constant 1.000000e+00 : f32
    %771 = vector.broadcast %cst_24 : f32 to vector<14x128xf32>
    %772 = arith.addf %771, %770 : vector<14x128xf32>
    %773 = arith.divf %771, %772 : vector<14x128xf32>
    %774 = vector.broadcast %107 : f32 to vector<14x128xf32>
    %775 = arith.addf %740, %774 : vector<14x128xf32>
    %776 = arith.negf %775 : vector<14x128xf32>
    %777 = math.exp %776 : vector<14x128xf32>
    %cst_25 = arith.constant 1.000000e+00 : f32
    %778 = vector.broadcast %cst_25 : f32 to vector<14x128xf32>
    %779 = arith.addf %778, %777 : vector<14x128xf32>
    %780 = arith.divf %778, %779 : vector<14x128xf32>
    %781 = vector.broadcast %108 : f32 to vector<14x128xf32>
    %782 = arith.addf %743, %781 : vector<14x128xf32>
    %783 = arith.negf %782 : vector<14x128xf32>
    %784 = math.exp %783 : vector<14x128xf32>
    %cst_26 = arith.constant 1.000000e+00 : f32
    %785 = vector.broadcast %cst_26 : f32 to vector<14x128xf32>
    %786 = arith.addf %785, %784 : vector<14x128xf32>
    %787 = arith.divf %785, %786 : vector<14x128xf32>
    %788 = vector.broadcast %109 : f32 to vector<14x128xf32>
    %789 = arith.addf %746, %788 : vector<14x128xf32>
    %790 = arith.negf %789 : vector<14x128xf32>
    %791 = math.exp %790 : vector<14x128xf32>
    %cst_27 = arith.constant 1.000000e+00 : f32
    %792 = vector.broadcast %cst_27 : f32 to vector<14x128xf32>
    %793 = arith.addf %792, %791 : vector<14x128xf32>
    %794 = arith.divf %792, %793 : vector<14x128xf32>
    %795 = vector.broadcast %110 : f32 to vector<14x128xf32>
    %796 = arith.addf %749, %795 : vector<14x128xf32>
    %797 = arith.negf %796 : vector<14x128xf32>
    %798 = math.exp %797 : vector<14x128xf32>
    %cst_28 = arith.constant 1.000000e+00 : f32
    %799 = vector.broadcast %cst_28 : f32 to vector<14x128xf32>
    %800 = arith.addf %799, %798 : vector<14x128xf32>
    %801 = arith.divf %799, %800 : vector<14x128xf32>
    %802 = vector.broadcast %111 : f32 to vector<14x128xf32>
    %803 = arith.addf %752, %802 : vector<14x128xf32>
    %804 = arith.negf %803 : vector<14x128xf32>
    %805 = math.exp %804 : vector<14x128xf32>
    %cst_29 = arith.constant 1.000000e+00 : f32
    %806 = vector.broadcast %cst_29 : f32 to vector<14x128xf32>
    %807 = arith.addf %806, %805 : vector<14x128xf32>
    %808 = arith.divf %806, %807 : vector<14x128xf32>
    %809 = tpu.concatenate %759, %766, %773, %780, %787, %794, %801, %808 in 0 : vector<14x128xf32>, vector<14x128xf32>, vector<14x128xf32>, vector<14x128xf32>, vector<14x128xf32>, vector<14x128xf32>, vector<14x128xf32>, vector<14x128xf32> -> vector<112x128xf32>
    %810 = tpu.concatenate %460, %809 in 0 : vector<112x128xf32>, vector<112x128xf32> -> vector<224x128xf32>
    %c0_30 = arith.constant 0 : index
    %c0_31 = arith.constant 0 : index
    %811 = vector.load %arg6[%c0_30, %c0_31] : memref<224x128xf32, #tpu.memory_space<vmem>>, vector<224x128xf32>
    tpu.vector_store %arg6[%c0_30, %c0_31], %810 {strides = array<i32>} : memref<224x128xf32, #tpu.memory_space<vmem>>, vector<224x128xf32>,
    return
  }
  func.func @transform_0(%arg0: i32) -> (i32, i32) {
    %c0_i32 = arith.constant 0 : i32
    %c0_i32_0 = arith.constant 0 : i32
    %c0_i32_1 = arith.constant 0 : i32
    return %c0_i32, %c0_i32_0 : i32, i32
  }
  func.func @transform_1(%arg0: i32) -> (i32, i32) {
    %c0_i32 = arith.constant 0 : i32
    %c0_i32_0 = arith.constant 0 : i32
    %c0_i32_1 = arith.constant 0 : i32
    return %c0_i32, %c0_i32_0 : i32, i32
  }
  func.func @transform_2(%arg0: i32) -> (i32, i32) {
    %c0_i32 = arith.constant 0 : i32
    %c0_i32_0 = arith.constant 0 : i32
    %c0_i32_1 = arith.constant 0 : i32
    return %c0_i32, %c0_i32_0 : i32, i32
  }
  func.func @transform_3(%arg0: i32) -> i32 {
    %c0_i32 = arith.constant 0 : i32
    %c0_i32_0 = arith.constant 0 : i32
    return %c0_i32 : i32
  }
  func.func @transform_4(%arg0: i32) -> i32 {
    %c0_i32 = arith.constant 0 : i32
    %c0_i32_0 = arith.constant 0 : i32
    return %c0_i32 : i32
  }
  func.func @transform_5(%arg0: i32) -> (i32, i32) {
    %c0_i32 = arith.constant 0 : i32
    %c0_i32_0 = arith.constant 0 : i32
    %c0_i32_1 = arith.constant 0 : i32
    return %c0_i32, %c0_i32_0 : i32, i32
  }
}

</mosaic_0001>

<llo_original>
// kernel: tpu_custom_call.1
$region0: #{tpu_custom_call.1}
  #allocation0 [shape = 'u32[]', space=smem, size = 0x4, offset = 0x4, fixed_abs, tag = 'smem constant byte address 0x4 - core index']
  #allocation1 [shape = 'u32[144,128]{1,0:T(1,128)}', space=vmem, size = 0x12000, scoped, tag = 'internal scratch']
  %s0 = inlined_call_operand.hbm [shape: f32[128,128], index: 0, kind: input, shape index: {}]
  %s1 = inlined_call_operand.hbm [shape: bf16[128,128], index: 1, kind: input, shape index: {}]
  %s2 = inlined_call_operand.vmem [shape: f32[1,128], index: 2, kind: input, shape index: {}]
  %s3 = inlined_call_operand.vmem [shape: f32[96], index: 3, kind: input, shape index: {}]
  %s4 = inlined_call_operand.vmem [shape: f32[8], index: 4, kind: input, shape index: {}]
  %s5 = inlined_call_operand.hbm [shape: f32[224,128], index: 5, kind: output, shape index: {}]
  %s6 = sld [smem:[#allocation0]]
  $region46: #{tpu_custom_call.1} parent=0
    _
  %s8 = ssub.s32 1, %s6
  %s9 = scalar_select 0, %s8, %s6
  $region1: #{tpu_custom_call.1} parent=0
    #allocation2 [shape = 'u8[65536]{0}', space=vmem, size = 0x10000, scoped, tag = 'input window, operand 0, single buffered']
    #allocation3 [shape = 's32[1]{0}', space=sflag, size = 0x4, scoped, tag = 'scoped memory for tpu_custom_call.1']
    #allocation4 [shape = 's32[1]{0}', space=sflag, size = 0x4, scoped, tag = 'scoped memory for tpu_custom_call.1']
    #allocation5 [shape = 's32[1]{0}', space=sflag, size = 0x4, scoped, tag = 'scoped memory for tpu_custom_call.1']
    #allocation6 [shape = 'u8[32768]{0}', space=vmem, size = 0x8000, scoped, tag = 'input window, operand 1, single buffered']
    #allocation7 [shape = 's32[1]{0}', space=sflag, size = 0x4, scoped, tag = 'scoped memory for tpu_custom_call.1']
    #allocation8 [shape = 'u8[512]{0}', space=smem, size = 0x200, scoped, tag = 'input window, operand 3, single buffered']
    #allocation9 [shape = 'u8[512]{0}', space=smem, size = 0x200, scoped, tag = 'input window, operand 4, single buffered']
    #allocation10 [shape = 's32[1]{0}', space=sflag, size = 0x4, scoped, tag = 'scoped memory for tpu_custom_call.1']
    #allocation11 [shape = 'u8[114688]{0}', space=vmem, size = 0x1c000, scoped, tag = 'output window, operand 0, single buffered']
    %10 = vsyncpa [#allocation3], 0
    %11 = vsyncpa [#allocation7], 0
    %12 = vsyncpa [#allocation5], 0
    %13 = vsyncpa [#allocation10], 0
    %14 = vsyncpa [#allocation4], 0
    // Predicated region
    $region2: #{tpu_custom_call.1} parent=1 // pred_check
      _
    $region3: #{tpu_custom_call.1} parent=1 // pred_check_branch
      %16 = sbr.rel (0) target = $region5
    $region4: #{tpu_custom_call.1} parent=1 // pred_region
      %s18 = ssub.s32 2048, 2048
      %19 = vsyncadd [#allocation3], %s18
      %s20 = sshll.u32 [#allocation2], 4
      %s21 = int_to_ptr.vmem [resolvable:$true] %s20
      %26 = dma.hbm_to_vmem [thread:$0]  %s0, 2048, %s21, [#allocation3], 128, 128, 8
    $region5: #{tpu_custom_call.1} parent=1 // pred_fallthru
      _
    // Predicated region
    $region6: #{tpu_custom_call.1} parent=1 // pred_check
      _
    $region7: #{tpu_custom_call.1} parent=1 // pred_check_branch
      %28 = sbr.rel (0) target = $region9
    $region8: #{tpu_custom_call.1} parent=1 // pred_region
      %s30 = ssub.s32 1024, 1024
      %31 = vsyncadd [#allocation7], %s30
      %s32 = sshll.u32 [#allocation6], 4
      %s33 = int_to_ptr.vmem [resolvable:$true] %s32
      %38 = dma.hbm_to_vmem [thread:$0]  %s1, 1024, %s33, [#allocation7], 64, 64, 4
    $region9: #{tpu_custom_call.1} parent=1 // pred_fallthru
      _
    // Predicated region
    $region10: #{tpu_custom_call.1} parent=1 // pred_check
      _
    $region11: #{tpu_custom_call.1} parent=1 // pred_check_branch
      %40 = sbr.rel (0) target = $region13
    $region12: #{tpu_custom_call.1} parent=1 // pred_region
      _
    $region13: #{tpu_custom_call.1} parent=1 // pred_fallthru
      _
    // Predicated region
    $region14: #{tpu_custom_call.1} parent=1 // pred_check
      _
    $region15: #{tpu_custom_call.1} parent=1 // pred_check_branch
      %42 = sbr.rel (0) target = $region17
    $region16: #{tpu_custom_call.1} parent=1 // pred_region
      %s44 = ssub.s32 16, 16
      %45 = vsyncadd [#allocation5], %s44
      %s47 = sshll.u32 %s3, 4
      %s48 = int_to_ptr.vmem [resolvable:$true] %s47
      %50 = dma.vmem_to_smem %s48, 16, [#allocation8], [#allocation5]
    $region17: #{tpu_custom_call.1} parent=1 // pred_fallthru
      _
    // Predicated region
    $region18: #{tpu_custom_call.1} parent=1 // pred_check
      _
    $region19: #{tpu_custom_call.1} parent=1 // pred_check_branch
      %52 = sbr.rel (0) target = $region21
    $region20: #{tpu_custom_call.1} parent=1 // pred_region
      %s54 = ssub.s32 16, 16
      %55 = vsyncadd [#allocation10], %s54
      %s57 = sshll.u32 %s4, 4
      %s58 = int_to_ptr.vmem [resolvable:$true] %s57
      %60 = dma.vmem_to_smem %s58, 16, [#allocation9], [#allocation10]
    $region21: #{tpu_custom_call.1} parent=1 // pred_fallthru
      _
    // Predicated region
    $region22: #{tpu_custom_call.1} parent=1 // pred_check
      _
    $region23: #{tpu_custom_call.1} parent=1 // pred_check_branch
      %62 = sbr.rel (0) target = $region25
    $region24: #{tpu_custom_call.1} parent=1 // pred_region
      %63 = dma.done [#allocation3], 2048
    $region25: #{tpu_custom_call.1} parent=1 // pred_fallthru
      _
    // Predicated region
    $region26: #{tpu_custom_call.1} parent=1 // pred_check
      _
    $region27: #{tpu_custom_call.1} parent=1 // pred_check_branch
      %65 = sbr.rel (0) target = $region29
    $region28: #{tpu_custom_call.1} parent=1 // pred_region
      %66 = dma.done [#allocation7], 1024
    $region29: #{tpu_custom_call.1} parent=1 // pred_fallthru
      _
    // Predicated region
    $region30: #{tpu_custom_call.1} parent=1 // pred_check
      _
    $region31: #{tpu_custom_call.1} parent=1 // pred_check_branch
      %68 = sbr.rel (0) target = $region33
    $region32: #{tpu_custom_call.1} parent=1 // pred_region
      %69 = dma.done [#allocation5], 16
    $region33: #{tpu_custom_call.1} parent=1 // pred_fallthru
      _
    // Predicated region
    $region34: #{tpu_custom_call.1} parent=1 // pred_check
      _
    $region35: #{tpu_custom_call.1} parent=1 // pred_check_branch
      %71 = sbr.rel (0) target = $region37
    $region36: #{tpu_custom_call.1} parent=1 // pred_region
      %72 = dma.done [#allocation10], 16
    $region37: #{tpu_custom_call.1} parent=1 // pred_fallthru
      _
    %73 = sfence
    %v75 = vld [vmem:[#allocation2] sm:$0xff]
    %v76 = vld [vmem:[#allocation2 + $0x8] sm:$0xff]
    %v77 = vld [vmem:[#allocation2 + $0x10] sm:$0xff]
    %v78 = vld [vmem:[#allocation2 + $0x18] sm:$0xff]
    %v79 = vld [vmem:[#allocation2 + $0x20] sm:$0xff]
    %v80 = vld [vmem:[#allocation2 + $0x28] sm:$0xff]
    %v81 = vld [vmem:[#allocation2 + $0x30] sm:$0xff]
    %v82 = vld [vmem:[#allocation2 + $0x38] sm:$0xff]
    %v83 = vld [vmem:[#allocation2 + $0x40] sm:$0xff]
    %v84 = vld [vmem:[#allocation2 + $0x48] sm:$0xff]
    %v85 = vld [vmem:[#allocation2 + $0x50] sm:$0xff]
    %v86 = vld [vmem:[#allocation2 + $0x58] sm:$0xff]
    %v87 = vld [vmem:[#allocation2 + $0x60] sm:$0xff]
    %v88 = vld [vmem:[#allocation2 + $0x68] sm:$0xff]
    %v89 = vld [vmem:[#allocation2 + $0x70] sm:$0xff]
    %v90 = vld [vmem:[#allocation2 + $0x78] sm:$0xff]
    %v91 = vpack.c.bf16 %v76, %v75
    %v92 = vpack.c.bf16 %v78, %v77
    %v93 = vpack.c.bf16 %v80, %v79
    %v94 = vpack.c.bf16 %v82, %v81
    %v95 = vpack.c.bf16 %v84, %v83
    %v96 = vpack.c.bf16 %v86, %v85
    %v97 = vpack.c.bf16 %v88, %v87
    %v98 = vpack.c.bf16 %v90, %v89
    %v99 = vld [vmem:[#allocation6] sm:$0xf]
    %v100 = vld [vmem:[#allocation6 + $0x4] sm:$0xf]
    %v101 = vld [vmem:[#allocation6 + $0x8] sm:$0xf]
    %v102 = vld [vmem:[#allocation6 + $0xc] sm:$0xf]
    %v103 = vld [vmem:[#allocation6 + $0x10] sm:$0xf]
    %v104 = vld [vmem:[#allocation6 + $0x14] sm:$0xf]
    %v105 = vld [vmem:[#allocation6 + $0x18] sm:$0xf]
    %v106 = vld [vmem:[#allocation6 + $0x1c] sm:$0xf]
    %v107 = vld [vmem:[#allocation6 + $0x20] sm:$0xf]
    %v108 = vld [vmem:[#allocation6 + $0x24] sm:$0xf]
    %v109 = vld [vmem:[#allocation6 + $0x28] sm:$0xf]
    %v110 = vld [vmem:[#allocation6 + $0x2c] sm:$0xf]
    %v111 = vld [vmem:[#allocation6 + $0x30] sm:$0xf]
    %v112 = vld [vmem:[#allocation6 + $0x34] sm:$0xf]
    %v113 = vld [vmem:[#allocation6 + $0x38] sm:$0xf]
    %v114 = vld [vmem:[#allocation6 + $0x3c] sm:$0xf]
    %v115 = vld [vmem:[%s2] sm:$0x1]
    %v117 = vlaneseq
    %v118 = vshrl.u32 %v117, 7
    %v119 = vsub.s32 0, %v118
    %v120 = vrot.slane %v115, %v119
    %v138 = vunpack.c.l.b16 %v99
    %v139 = vunpack.c.l.b16 %v100
    %v140 = vunpack.c.l.b16 %v101
    %v141 = vunpack.c.l.b16 %v102
    %v142 = vunpack.c.l.b16 %v103
    %v143 = vunpack.c.l.b16 %v104
    %v144 = vunpack.c.l.b16 %v105
    %v145 = vunpack.c.l.b16 %v106
    %v146 = vunpack.c.l.b16 %v107
    %v147 = vunpack.c.l.b16 %v108
    %v148 = vunpack.c.l.b16 %v109
    %v149 = vunpack.c.l.b16 %v110
    %v150 = vunpack.c.l.b16 %v111
    %v151 = vunpack.c.l.b16 %v112
    %v152 = vunpack.c.l.b16 %v113
    %v153 = vunpack.c.l.b16 %v114
    %v154 = vpack.c.b16 %v139, %v138
    %v155 = vpack.c.b16 %v141, %v140
    %v156 = vpack.c.b16 %v143, %v142
    %v157 = vpack.c.b16 %v145, %v144
    %v158 = vpack.c.b16 %v147, %v146
    %v159 = vpack.c.b16 %v149, %v148
    %v160 = vpack.c.b16 %v151, %v150
    %v161 = vpack.c.b16 %v153, %v152
    %170 = vmatprep.subr.bf16.mxu0 0
    %171 = vmatpush1.bf16.msra.mxu0 %v154
    %172 = vmatprep.subr.bf16.mxu0 0
    %173 = vmatpush1.bf16.msra.mxu0 %v155
    %174 = vmatprep.subr.bf16.mxu0 0
    %175 = vmatpush1.bf16.msra.mxu0 %v156
    %176 = vmatprep.subr.bf16.mxu0 0
    %177 = vmatpush1.bf16.msra.mxu0 %v157
    %178 = vmatprep.subr.bf16.mxu0 0
    %179 = vmatpush1.bf16.msra.mxu0 %v158
    %180 = vmatprep.subr.bf16.mxu0 0
    %181 = vmatpush1.bf16.msra.mxu0 %v159
    %182 = vmatprep.subr.bf16.mxu0 0
    %183 = vmatpush1.bf16.msra.mxu0 %v160
    %184 = vmatprep.subr.bf16.mxu0 0
    %185 = vmatpush1.bf16.msra.mxu0 %v161
    %186 = vmatprep.subr.bf16.mxu0 0
    %187 = vmatpush1.bf16.msra.mxu0 0
    %188 = vmatprep.subr.bf16.mxu0 0
    %189 = vmatpush1.bf16.msra.mxu0 0
    %190 = vmatprep.subr.bf16.mxu0 0
    %191 = vmatpush1.bf16.msra.mxu0 0
    %192 = vmatprep.subr.bf16.mxu0 0
    %193 = vmatpush1.bf16.msra.mxu0 0
    %194 = vmatprep.subr.bf16.mxu0 0
    %195 = vmatpush1.bf16.msra.mxu0 0
    %196 = vmatprep.subr.bf16.mxu0 0
    %197 = vmatpush1.bf16.msra.mxu0 0
    %198 = vmatprep.subr.bf16.mxu0 0
    %199 = vmatpush1.bf16.msra.mxu0 0
    %200 = vmatprep.subr.bf16.mxu0 0
    %201 = vmatpush1.bf16.msra.mxu0 0
    %202 = vmatprep.mubr.bf16.mxu0 0
    %203 = vmatmul.mubr.bf16.gmra.mrb[0].mxu0 %v91
    %v204 = vpop.f32.mrb[0].mxu0
    %v205 = vadd.f32 %v120, %v204
    %v206 = vpop.f32.mrb[0].mxu0
    %v207 = vpop.f32.mrb[0].mxu0
    %v208 = vadd.f32 %v120, %v207
    %v209 = vpop.f32.mrb[0].mxu0
    %210 = vmatprep.mubr.bf16.mxu0 0
    %211 = vmatmul.mubr.bf16.gmra.mrb[0].mxu0 %v92
    %v212 = vpop.f32.mrb[0].mxu0
    %v213 = vadd.f32 %v120, %v212
    %v214 = vpop.f32.mrb[0].mxu0
    %v215 = vpop.f32.mrb[0].mxu0
    %v216 = vadd.f32 %v120, %v215
    %v217 = vpop.f32.mrb[0].mxu0
    %218 = vmatprep.mubr.bf16.mxu0 0
    %219 = vmatmul.mubr.bf16.gmra.mrb[0].mxu0 %v93
    %v220 = vpop.f32.mrb[0].mxu0
    %v221 = vadd.f32 %v120, %v220
    %v222 = vpop.f32.mrb[0].mxu0
    %v223 = vpop.f32.mrb[0].mxu0
    %v224 = vadd.f32 %v120, %v223
    %v225 = vpop.f32.mrb[0].mxu0
    %226 = vmatprep.mubr.bf16.mxu0 0
    %227 = vmatmul.mubr.bf16.gmra.mrb[0].mxu0 %v94
    %v228 = vpop.f32.mrb[0].mxu0
    %v229 = vadd.f32 %v120, %v228
    %v230 = vpop.f32.mrb[0].mxu0
    %v231 = vpop.f32.mrb[0].mxu0
    %v232 = vadd.f32 %v120, %v231
    %v233 = vpop.f32.mrb[0].mxu0
    %234 = vmatprep.mubr.bf16.mxu0 0
    %235 = vmatmul.mubr.bf16.gmra.mrb[0].mxu0 %v95
    %v236 = vpop.f32.mrb[0].mxu0
    %v237 = vadd.f32 %v120, %v236
    %v238 = vpop.f32.mrb[0].mxu0
    %v239 = vpop.f32.mrb[0].mxu0
    %v240 = vadd.f32 %v120, %v239
    %v241 = vpop.f32.mrb[0].mxu0
    %242 = vmatprep.mubr.bf16.mxu0 0
    %243 = vmatmul.mubr.bf16.gmra.mrb[0].mxu0 %v96
    %v244 = vpop.f32.mrb[0].mxu0
    %v245 = vadd.f32 %v120, %v244
    %v246 = vpop.f32.mrb[0].mxu0
    %v247 = vpop.f32.mrb[0].mxu0
    %v248 = vadd.f32 %v120, %v247
    %v249 = vpop.f32.mrb[0].mxu0
    %250 = vmatprep.mubr.bf16.mxu0 0
    %251 = vmatmul.mubr.bf16.gmra.mrb[0].mxu0 %v97
    %v252 = vpop.f32.mrb[0].mxu0
    %v253 = vadd.f32 %v120, %v252
    %v254 = vpop.f32.mrb[0].mxu0
    %v255 = vpop.f32.mrb[0].mxu0
    %v256 = vadd.f32 %v120, %v255
    %v257 = vpop.f32.mrb[0].mxu0
    %258 = vmatprep.mubr.bf16.mxu0 0
    %259 = vmatmul.mubr.bf16.gmra.mrb[0].mxu0 %v98
    %v260 = vpop.f32.mrb[0].mxu0
    %v261 = vadd.f32 %v120, %v260
    %v262 = vpop.f32.mrb[0].mxu0
    %v263 = vpop.f32.mrb[0].mxu0
    %v264 = vadd.f32 %v120, %v263
    %v265 = vpop.f32.mrb[0].mxu0
    %266 = vdwg.mxu0
    %v267 = vadd.f32 %v205, %v75
    %v268 = vadd.f32 %v208, %v76
    %v269 = vadd.f32 %v213, %v77
    %v270 = vadd.f32 %v216, %v78
    %v271 = vadd.f32 %v221, %v79
    %v272 = vadd.f32 %v224, %v80
    %v273 = vadd.f32 %v229, %v81
    %v274 = vadd.f32 %v232, %v82
    %v275 = vadd.f32 %v237, %v83
    %v276 = vadd.f32 %v240, %v84
    %v277 = vadd.f32 %v245, %v85
    %v278 = vadd.f32 %v248, %v86
    %v279 = vadd.f32 %v253, %v87
    %v280 = vadd.f32 %v256, %v88
    %v281 = vadd.f32 %v261, %v89
    %v282 = vadd.f32 %v264, %v90
    %s283 = sld [smem:[#allocation8]]
    %s284 = sld [smem:[#allocation8 + $0x1]]
    %s285 = sld [smem:[#allocation8 + $0x2]]
    %s286 = sld [smem:[#allocation8 + $0x3]]
    %s287 = sld [smem:[#allocation8 + $0x4]]
    %s288 = sld [smem:[#allocation8 + $0x5]]
    %s289 = sld [smem:[#allocation8 + $0x6]]
    %s290 = sld [smem:[#allocation8 + $0x7]]
    %s291 = sld [smem:[#allocation8 + $0x8]]
    %s292 = sld [smem:[#allocation8 + $0x9]]
    %s293 = sld [smem:[#allocation8 + $0xa]]
    %s294 = sld [smem:[#allocation8 + $0xb]]
    %s295 = sld [smem:[#allocation8 + $0xc]]
    %s296 = sld [smem:[#allocation8 + $0xd]]
    %s297 = sld [smem:[#allocation8 + $0xe]]
    %s298 = sld [smem:[#allocation8 + $0xf]]
    %s299 = sld [smem:[#allocation8 + $0x10]]
    %s300 = sld [smem:[#allocation8 + $0x11]]
    %s301 = sld [smem:[#allocation8 + $0x12]]
    %s302 = sld [smem:[#allocation8 + $0x13]]
    %s303 = sld [smem:[#allocation8 + $0x14]]
    %s304 = sld [smem:[#allocation8 + $0x15]]
    %s305 = sld [smem:[#allocation8 + $0x16]]
    %s306 = sld [smem:[#allocation8 + $0x17]]
    %s307 = sld [smem:[#allocation8 + $0x18]]
    %s308 = sld [smem:[#allocation8 + $0x19]]
    %s309 = sld [smem:[#allocation8 + $0x1a]]
    %s310 = sld [smem:[#allocation8 + $0x1b]]
    %s311 = sld [smem:[#allocation8 + $0x1c]]
    %s312 = sld [smem:[#allocation8 + $0x1d]]
    %s313 = sld [smem:[#allocation8 + $0x1e]]
    %s314 = sld [smem:[#allocation8 + $0x1f]]
    %s315 = sld [smem:[#allocation8 + $0x20]]
    %s316 = sld [smem:[#allocation8 + $0x21]]
    %s317 = sld [smem:[#allocation8 + $0x22]]
    %s318 = sld [smem:[#allocation8 + $0x23]]
    %s319 = sld [smem:[#allocation8 + $0x24]]
    %s320 = sld [smem:[#allocation8 + $0x25]]
    %s321 = sld [smem:[#allocation8 + $0x26]]
    %s322 = sld [smem:[#allocation8 + $0x27]]
    %s323 = sld [smem:[#allocation8 + $0x28]]
    %s324 = sld [smem:[#allocation8 + $0x29]]
    %s325 = sld [smem:[#allocation8 + $0x2a]]
    %s326 = sld [smem:[#allocation8 + $0x2b]]
    %s327 = sld [smem:[#allocation8 + $0x2c]]
    %s328 = sld [smem:[#allocation8 + $0x2d]]
    %s329 = sld [smem:[#allocation8 + $0x2e]]
    %s330 = sld [smem:[#allocation8 + $0x2f]]
    %s331 = sld [smem:[#allocation8 + $0x30]]
    %s332 = sld [smem:[#allocation8 + $0x31]]
    %s333 = sld [smem:[#allocation8 + $0x32]]
    %s334 = sld [smem:[#allocation8 + $0x33]]
    %s335 = sld [smem:[#allocation8 + $0x34]]
    %s336 = sld [smem:[#allocation8 + $0x35]]
    %s337 = sld [smem:[#allocation8 + $0x36]]
    %s338 = sld [smem:[#allocation8 + $0x37]]
    %s339 = sld [smem:[#allocation8 + $0x38]]
    %s340 = sld [smem:[#allocation8 + $0x39]]
    %s341 = sld [smem:[#allocation8 + $0x3a]]
    %s342 = sld [smem:[#allocation8 + $0x3b]]
    %s343 = sld [smem:[#allocation8 + $0x3c]]
    %s344 = sld [smem:[#allocation8 + $0x3d]]
    %s345 = sld [smem:[#allocation8 + $0x3e]]
    %s346 = sld [smem:[#allocation8 + $0x3f]]
    %s347 = sld [smem:[#allocation8 + $0x40]]
    %s348 = sld [smem:[#allocation8 + $0x41]]
    %s349 = sld [smem:[#allocation8 + $0x42]]
    %s350 = sld [smem:[#allocation8 + $0x43]]
    %s351 = sld [smem:[#allocation8 + $0x44]]
    %s352 = sld [smem:[#allocation8 + $0x45]]
    %s353 = sld [smem:[#allocation8 + $0x46]]
    %s354 = sld [smem:[#allocation8 + $0x47]]
    %s355 = sld [smem:[#allocation8 + $0x48]]
    %s356 = sld [smem:[#allocation8 + $0x49]]
    %s357 = sld [smem:[#allocation8 + $0x4a]]
    %s358 = sld [smem:[#allocation8 + $0x4b]]
    %s359 = sld [smem:[#allocation8 + $0x4c]]
    %s360 = sld [smem:[#allocation8 + $0x4d]]
    %s361 = sld [smem:[#allocation8 + $0x4e]]
    %s362 = sld [smem:[#allocation8 + $0x4f]]
    %s363 = sld [smem:[#allocation8 + $0x50]]
    %s364 = sld [smem:[#allocation8 + $0x51]]
    %s365 = sld [smem:[#allocation8 + $0x52]]
    %s366 = sld [smem:[#allocation8 + $0x53]]
    %s367 = sld [smem:[#allocation8 + $0x54]]
    %s368 = sld [smem:[#allocation8 + $0x55]]
    %s369 = sld [smem:[#allocation8 + $0x56]]
    %s370 = sld [smem:[#allocation8 + $0x57]]
    %s371 = sld [smem:[#allocation8 + $0x58]]
    %s372 = sld [smem:[#allocation8 + $0x59]]
    %s373 = sld [smem:[#allocation8 + $0x5a]]
    %s374 = sld [smem:[#allocation8 + $0x5b]]
    %s375 = sld [smem:[#allocation8 + $0x5c]]
    %s376 = sld [smem:[#allocation8 + $0x5d]]
    %s377 = sld [smem:[#allocation8 + $0x5e]]
    %s378 = sld [smem:[#allocation8 + $0x5f]]
    %s379 = sld [smem:[#allocation9]]
    %s380 = sld [smem:[#allocation9 + $0x1]]
    %s381 = sld [smem:[#allocation9 + $0x2]]
    %s382 = sld [smem:[#allocation9 + $0x3]]
    %s383 = sld [smem:[#allocation9 + $0x4]]
    %s384 = sld [smem:[#allocation9 + $0x5]]
    %s385 = sld [smem:[#allocation9 + $0x6]]
    %s386 = sld [smem:[#allocation9 + $0x7]]
    %v387 = vstv %s283
    %v388 = vmul.f32 %v387, %v267
    %v389 = vmul.f32 %v387, %v268
    %v390 = vstv %s295
    %v391 = vmul.f32 %v390, %v267
    %v392 = vmul.f32 %v390, %v268
    %v393 = vstv %s307
    %v394 = vmul.f32 %v393, %v267
    %v395 = vmul.f32 %v393, %v268
    %v396 = vstv %s319
    %v397 = vmul.f32 %v396, %v267
    %v398 = vmul.f32 %v396, %v268
    %v399 = vstv %s331
    %v400 = vmul.f32 %v399, %v267
    %v401 = vmul.f32 %v399, %v268
    %v402 = vstv %s343
    %v403 = vmul.f32 %v402, %v267
    %v404 = vmul.f32 %v402, %v268
    %v405 = vstv %s355
    %v406 = vmul.f32 %v405, %v267
    %v407 = vmul.f32 %v405, %v268
    %v408 = vstv %s367
    %v409 = vmul.f32 %v408, %v267
    %v410 = vmul.f32 %v408, %v268
    %v411 = vstv %s284
    %v412 = vmul.f32 %v411, %v267
    %v413 = vmul.f32 %v411, %v268
    %vm416 = vcmask 1046528
    %v417 = vrot.slane %v412, 1
    %v418 = vrot.slane %v413, 1
    %v419 = vsel %vm416, %v417, %v418
    %v422 = vadd.f32 %v388, %v419
    %v423 = vadd.f32 %v389, %v418
    %v424 = vstv %s296
    %v425 = vmul.f32 %v424, %v267
    %v426 = vmul.f32 %v424, %v268
    %v429 = vrot.slane %v425, 1
    %v430 = vrot.slane %v426, 1
    %v431 = vsel %vm416, %v429, %v430
    %v434 = vadd.f32 %v391, %v431
    %v435 = vadd.f32 %v392, %v430
    %v436 = vstv %s308
    %v437 = vmul.f32 %v436, %v267
    %v438 = vmul.f32 %v436, %v268
    %v441 = vrot.slane %v437, 1
    %v442 = vrot.slane %v438, 1
    %v443 = vsel %vm416, %v441, %v442
    %v446 = vadd.f32 %v394, %v443
    %v447 = vadd.f32 %v395, %v442
    %v448 = vstv %s320
    %v449 = vmul.f32 %v448, %v267
    %v450 = vmul.f32 %v448, %v268
    %v453 = vrot.slane %v449, 1
    %v454 = vrot.slane %v450, 1
    %v455 = vsel %vm416, %v453, %v454
    %v458 = vadd.f32 %v397, %v455
    %v459 = vadd.f32 %v398, %v454
    %v460 = vstv %s332
    %v461 = vmul.f32 %v460, %v267
    %v462 = vmul.f32 %v460, %v268
    %v465 = vrot.slane %v461, 1
    %v466 = vrot.slane %v462, 1
    %v467 = vsel %vm416, %v465, %v466
    %v470 = vadd.f32 %v400, %v467
    %v471 = vadd.f32 %v401, %v466
    %v472 = vstv %s344
    %v473 = vmul.f32 %v472, %v267
    %v474 = vmul.f32 %v472, %v268
    %v477 = vrot.slane %v473, 1
    %v478 = vrot.slane %v474, 1
    %v479 = vsel %vm416, %v477, %v478
    %v482 = vadd.f32 %v403, %v479
    %v483 = vadd.f32 %v404, %v478
    %v484 = vstv %s356
    %v485 = vmul.f32 %v484, %v267
    %v486 = vmul.f32 %v484, %v268
    %v489 = vrot.slane %v485, 1
    %v490 = vrot.slane %v486, 1
    %v491 = vsel %vm416, %v489, %v490
    %v494 = vadd.f32 %v406, %v491
    %v495 = vadd.f32 %v407, %v490
    %v496 = vstv %s368
    %v497 = vmul.f32 %v496, %v267
    %v498 = vmul.f32 %v496, %v268
    %v501 = vrot.slane %v497, 1
    %v502 = vrot.slane %v498, 1
    %v503 = vsel %vm416, %v501, %v502
    %v506 = vadd.f32 %v409, %v503
    %v507 = vadd.f32 %v410, %v502
    %v508 = vstv %s285
    %v509 = vmul.f32 %v508, %v267
    %v510 = vmul.f32 %v508, %v268
    %vm513 = vcmask 1045504
    %v514 = vrot.slane %v509, 2
    %v515 = vrot.slane %v510, 2
    %v516 = vsel %vm513, %v514, %v515
    %v519 = vadd.f32 %v422, %v516
    %v520 = vadd.f32 %v423, %v515
    %v521 = vstv %s297
    %v522 = vmul.f32 %v521, %v267
    %v523 = vmul.f32 %v521, %v268
    %v526 = vrot.slane %v522, 2
    %v527 = vrot.slane %v523, 2
    %v528 = vsel %vm513, %v526, %v527
    %v531 = vadd.f32 %v434, %v528
    %v532 = vadd.f32 %v435, %v527
    %v533 = vstv %s309
    %v534 = vmul.f32 %v533, %v267
    %v535 = vmul.f32 %v533, %v268
    %v538 = vrot.slane %v534, 2
    %v539 = vrot.slane %v535, 2
    %v540 = vsel %vm513, %v538, %v539
    %v543 = vadd.f32 %v446, %v540
    %v544 = vadd.f32 %v447, %v539
    %v545 = vstv %s321
    %v546 = vmul.f32 %v545, %v267
    %v547 = vmul.f32 %v545, %v268
    %v550 = vrot.slane %v546, 2
    %v551 = vrot.slane %v547, 2
    %v552 = vsel %vm513, %v550, %v551
    %v555 = vadd.f32 %v458, %v552
    %v556 = vadd.f32 %v459, %v551
    %v557 = vstv %s333
    %v558 = vmul.f32 %v557, %v267
    %v559 = vmul.f32 %v557, %v268
    %v562 = vrot.slane %v558, 2
    %v563 = vrot.slane %v559, 2
    %v564 = vsel %vm513, %v562, %v563
    %v567 = vadd.f32 %v470, %v564
    %v568 = vadd.f32 %v471, %v563
    %v569 = vstv %s345
    %v570 = vmul.f32 %v569, %v267
    %v571 = vmul.f32 %v569, %v268
    %v574 = vrot.slane %v570, 2
    %v575 = vrot.slane %v571, 2
    %v576 = vsel %vm513, %v574, %v575
    %v579 = vadd.f32 %v482, %v576
    %v580 = vadd.f32 %v483, %v575
    %v581 = vstv %s357
    %v582 = vmul.f32 %v581, %v267
    %v583 = vmul.f32 %v581, %v268
    %v586 = vrot.slane %v582, 2
    %v587 = vrot.slane %v583, 2
    %v588 = vsel %vm513, %v586, %v587
    %v591 = vadd.f32 %v494, %v588
    %v592 = vadd.f32 %v495, %v587
    %v593 = vstv %s369
    %v594 = vmul.f32 %v593, %v267
    %v595 = vmul.f32 %v593, %v268
    %v598 = vrot.slane %v594, 2
    %v599 = vrot.slane %v595, 2
    %v600 = vsel %vm513, %v598, %v599
    %v603 = vadd.f32 %v506, %v600
    %v604 = vadd.f32 %v507, %v599
    %v605 = vstv %s286
    %v606 = vmul.f32 %v605, %v269
    %v607 = vmul.f32 %v605, %v270
    %v608 = vadd.f32 %v519, %v606
    %v609 = vadd.f32 %v520, %v607
    %v610 = vstv %s298
    %v611 = vmul.f32 %v610, %v269
    %v612 = vmul.f32 %v610, %v270
    %v613 = vadd.f32 %v531, %v611
    %v614 = vadd.f32 %v532, %v612
    %v615 = vstv %s310
    %v616 = vmul.f32 %v615, %v269
    %v617 = vmul.f32 %v615, %v270
    %v618 = vadd.f32 %v543, %v616
    %v619 = vadd.f32 %v544, %v617
    %v620 = vstv %s322
    %v621 = vmul.f32 %v620, %v269
    %v622 = vmul.f32 %v620, %v270
    %v623 = vadd.f32 %v555, %v621
    %v624 = vadd.f32 %v556, %v622
    %v625 = vstv %s334
    %v626 = vmul.f32 %v625, %v269
    %v627 = vmul.f32 %v625, %v270
    %v628 = vadd.f32 %v567, %v626
    %v629 = vadd.f32 %v568, %v627
    %v630 = vstv %s346
    %v631 = vmul.f32 %v630, %v269
    %v632 = vmul.f32 %v630, %v270
    %v633 = vadd.f32 %v579, %v631
    %v634 = vadd.f32 %v580, %v632
    %v635 = vstv %s358
    %v636 = vmul.f32 %v635, %v269
    %v637 = vmul.f32 %v635, %v270
    %v638 = vadd.f32 %v591, %v636
    %v639 = vadd.f32 %v592, %v637
    %v640 = vstv %s370
    %v641 = vmul.f32 %v640, %v269
    %v642 = vmul.f32 %v640, %v270
    %v643 = vadd.f32 %v603, %v641
    %v644 = vadd.f32 %v604, %v642
    %v645 = vstv %s287
    %v646 = vmul.f32 %v645, %v269
    %v647 = vmul.f32 %v645, %v270
    %v650 = vrot.slane %v646, 1
    %v651 = vrot.slane %v647, 1
    %v652 = vsel %vm416, %v650, %v651
    %v655 = vadd.f32 %v608, %v652
    %v656 = vadd.f32 %v609, %v651
    %v657 = vstv %s299
    %v658 = vmul.f32 %v657, %v269
    %v659 = vmul.f32 %v657, %v270
    %v662 = vrot.slane %v658, 1
    %v663 = vrot.slane %v659, 1
    %v664 = vsel %vm416, %v662, %v663
    %v667 = vadd.f32 %v613, %v664
    %v668 = vadd.f32 %v614, %v663
    %v669 = vstv %s311
    %v670 = vmul.f32 %v669, %v269
    %v671 = vmul.f32 %v669, %v270
    %v674 = vrot.slane %v670, 1
    %v675 = vrot.slane %v671, 1
    %v676 = vsel %vm416, %v674, %v675
    %v679 = vadd.f32 %v618, %v676
    %v680 = vadd.f32 %v619, %v675
    %v681 = vstv %s323
    %v682 = vmul.f32 %v681, %v269
    %v683 = vmul.f32 %v681, %v270
    %v686 = vrot.slane %v682, 1
    %v687 = vrot.slane %v683, 1
    %v688 = vsel %vm416, %v686, %v687
    %v691 = vadd.f32 %v623, %v688
    %v692 = vadd.f32 %v624, %v687
    %v693 = vstv %s335
    %v694 = vmul.f32 %v693, %v269
    %v695 = vmul.f32 %v693, %v270
    %v698 = vrot.slane %v694, 1
    %v699 = vrot.slane %v695, 1
    %v700 = vsel %vm416, %v698, %v699
    %v703 = vadd.f32 %v628, %v700
    %v704 = vadd.f32 %v629, %v699
    %v705 = vstv %s347
    %v706 = vmul.f32 %v705, %v269
    %v707 = vmul.f32 %v705, %v270
    %v710 = vrot.slane %v706, 1
    %v711 = vrot.slane %v707, 1
    %v712 = vsel %vm416, %v710, %v711
    %v715 = vadd.f32 %v633, %v712
    %v716 = vadd.f32 %v634, %v711
    %v717 = vstv %s359
    %v718 = vmul.f32 %v717, %v269
    %v719 = vmul.f32 %v717, %v270
    %v722 = vrot.slane %v718, 1
    %v723 = vrot.slane %v719, 1
    %v724 = vsel %vm416, %v722, %v723
    %v727 = vadd.f32 %v638, %v724
    %v728 = vadd.f32 %v639, %v723
    %v729 = vstv %s371
    %v730 = vmul.f32 %v729, %v269
    %v731 = vmul.f32 %v729, %v270
    %v734 = vrot.slane %v730, 1
    %v735 = vrot.slane %v731, 1
    %v736 = vsel %vm416, %v734, %v735
    %v739 = vadd.f32 %v643, %v736
    %v740 = vadd.f32 %v644, %v735
    %v741 = vstv %s288
    %v742 = vmul.f32 %v741, %v269
    %v743 = vmul.f32 %v741, %v270
    %v746 = vrot.slane %v742, 2
    %v747 = vrot.slane %v743, 2
    %v748 = vsel %vm513, %v746, %v747
    %v751 = vadd.f32 %v655, %v748
    %v752 = vadd.f32 %v656, %v747
    %v753 = vstv %s300
    %v754 = vmul.f32 %v753, %v269
    %v755 = vmul.f32 %v753, %v270
    %v758 = vrot.slane %v754, 2
    %v759 = vrot.slane %v755, 2
    %v760 = vsel %vm513, %v758, %v759
    %v763 = vadd.f32 %v667, %v760
    %v764 = vadd.f32 %v668, %v759
    %v765 = vstv %s312
    %v766 = vmul.f32 %v765, %v269
    %v767 = vmul.f32 %v765, %v270
    %v770 = vrot.slane %v766, 2
    %v771 = vrot.slane %v767, 2
    %v772 = vsel %vm513, %v770, %v771
    %v775 = vadd.f32 %v679, %v772
    %v776 = vadd.f32 %v680, %v771
    %v777 = vstv %s324
    %v778 = vmul.f32 %v777, %v269
    %v779 = vmul.f32 %v777, %v270
    %v782 = vrot.slane %v778, 2
    %v783 = vrot.slane %v779, 2
    %v784 = vsel %vm513, %v782, %v783
    %v787 = vadd.f32 %v691, %v784
    %v788 = vadd.f32 %v692, %v783
    %v789 = vstv %s336
    %v790 = vmul.f32 %v789, %v269
    %v791 = vmul.f32 %v789, %v270
    %v794 = vrot.slane %v790, 2
    %v795 = vrot.slane %v791, 2
    %v796 = vsel %vm513, %v794, %v795
    %v799 = vadd.f32 %v703, %v796
    %v800 = vadd.f32 %v704, %v795
    %v801 = vstv %s348
    %v802 = vmul.f32 %v801, %v269
    %v803 = vmul.f32 %v801, %v270
    %v806 = vrot.slane %v802, 2
    %v807 = vrot.slane %v803, 2
    %v808 = vsel %vm513, %v806, %v807
    %v811 = vadd.f32 %v715, %v808
    %v812 = vadd.f32 %v716, %v807
    %v813 = vstv %s360
    %v814 = vmul.f32 %v813, %v269
    %v815 = vmul.f32 %v813, %v270
    %v818 = vrot.slane %v814, 2
    %v819 = vrot.slane %v815, 2
    %v820 = vsel %vm513, %v818, %v819
    %v823 = vadd.f32 %v727, %v820
    %v824 = vadd.f32 %v728, %v819
    %v825 = vstv %s372
    %v826 = vmul.f32 %v825, %v269
    %v827 = vmul.f32 %v825, %v270
    %v830 = vrot.slane %v826, 2
    %v831 = vrot.slane %v827, 2
    %v832 = vsel %vm513, %v830, %v831
    %v835 = vadd.f32 %v739, %v832
    %v836 = vadd.f32 %v740, %v831
    %v837 = vstv %s289
    %v838 = vmul.f32 %v837, %v271
    %v839 = vmul.f32 %v837, %v272
    %v840 = vadd.f32 %v751, %v838
    %v841 = vadd.f32 %v752, %v839
    %v842 = vstv %s301
    %v843 = vmul.f32 %v842, %v271
    %v844 = vmul.f32 %v842, %v272
    %v845 = vadd.f32 %v763, %v843
    %v846 = vadd.f32 %v764, %v844
    %v847 = vstv %s313
    %v848 = vmul.f32 %v847, %v271
    %v849 = vmul.f32 %v847, %v272
    %v850 = vadd.f32 %v775, %v848
    %v851 = vadd.f32 %v776, %v849
    %v852 = vstv %s325
    %v853 = vmul.f32 %v852, %v271
    %v854 = vmul.f32 %v852, %v272
    %v855 = vadd.f32 %v787, %v853
    %v856 = vadd.f32 %v788, %v854
    %v857 = vstv %s337
    %v858 = vmul.f32 %v857, %v271
    %v859 = vmul.f32 %v857, %v272
    %v860 = vadd.f32 %v799, %v858
    %v861 = vadd.f32 %v800, %v859
    %v862 = vstv %s349
    %v863 = vmul.f32 %v862, %v271
    %v864 = vmul.f32 %v862, %v272
    %v865 = vadd.f32 %v811, %v863
    %v866 = vadd.f32 %v812, %v864
    %v867 = vstv %s361
    %v868 = vmul.f32 %v867, %v271
    %v869 = vmul.f32 %v867, %v272
    %v870 = vadd.f32 %v823, %v868
    %v871 = vadd.f32 %v824, %v869
    %v872 = vstv %s373
    %v873 = vmul.f32 %v872, %v271
    %v874 = vmul.f32 %v872, %v272
    %v875 = vadd.f32 %v835, %v873
    %v876 = vadd.f32 %v836, %v874
    %v877 = vstv %s290
    %v878 = vmul.f32 %v877, %v271
    %v879 = vmul.f32 %v877, %v272
    %v882 = vrot.slane %v878, 1
    %v883 = vrot.slane %v879, 1
    %v884 = vsel %vm416, %v882, %v883
    %v887 = vadd.f32 %v840, %v884
    %v888 = vadd.f32 %v841, %v883
    %v889 = vstv %s302
    %v890 = vmul.f32 %v889, %v271
    %v891 = vmul.f32 %v889, %v272
    %v894 = vrot.slane %v890, 1
    %v895 = vrot.slane %v891, 1
    %v896 = vsel %vm416, %v894, %v895
    %v899 = vadd.f32 %v845, %v896
    %v900 = vadd.f32 %v846, %v895
    %v901 = vstv %s314
    %v902 = vmul.f32 %v901, %v271
    %v903 = vmul.f32 %v901, %v272
    %v906 = vrot.slane %v902, 1
    %v907 = vrot.slane %v903, 1
    %v908 = vsel %vm416, %v906, %v907
    %v911 = vadd.f32 %v850, %v908
    %v912 = vadd.f32 %v851, %v907
    %v913 = vstv %s326
    %v914 = vmul.f32 %v913, %v271
    %v915 = vmul.f32 %v913, %v272
    %v918 = vrot.slane %v914, 1
    %v919 = vrot.slane %v915, 1
    %v920 = vsel %vm416, %v918, %v919
    %v923 = vadd.f32 %v855, %v920
    %v924 = vadd.f32 %v856, %v919
    %v925 = vstv %s338
    %v926 = vmul.f32 %v925, %v271
    %v927 = vmul.f32 %v925, %v272
    %v930 = vrot.slane %v926, 1
    %v931 = vrot.slane %v927, 1
    %v932 = vsel %vm416, %v930, %v931
    %v935 = vadd.f32 %v860, %v932
    %v936 = vadd.f32 %v861, %v931
    %v937 = vstv %s350
    %v938 = vmul.f32 %v937, %v271
    %v939 = vmul.f32 %v937, %v272
    %v942 = vrot.slane %v938, 1
    %v943 = vrot.slane %v939, 1
    %v944 = vsel %vm416, %v942, %v943
    %v947 = vadd.f32 %v865, %v944
    %v948 = vadd.f32 %v866, %v943
    %v949 = vstv %s362
    %v950 = vmul.f32 %v949, %v271
    %v951 = vmul.f32 %v949, %v272
    %v954 = vrot.slane %v950, 1
    %v955 = vrot.slane %v951, 1
    %v956 = vsel %vm416, %v954, %v955
    %v959 = vadd.f32 %v870, %v956
    %v960 = vadd.f32 %v871, %v955
    %v961 = vstv %s374
    %v962 = vmul.f32 %v961, %v271
    %v963 = vmul.f32 %v961, %v272
    %v966 = vrot.slane %v962, 1
    %v967 = vrot.slane %v963, 1
    %v968 = vsel %vm416, %v966, %v967
    %v971 = vadd.f32 %v875, %v968
    %v972 = vadd.f32 %v876, %v967
    %v973 = vstv %s291
    %v974 = vmul.f32 %v973, %v271
    %v975 = vmul.f32 %v973, %v272
    %v978 = vrot.slane %v974, 2
    %v979 = vrot.slane %v975, 2
    %v980 = vsel %vm513, %v978, %v979
    %v983 = vadd.f32 %v887, %v980
    %v984 = vadd.f32 %v888, %v979
    %v985 = vstv %s303
    %v986 = vmul.f32 %v985, %v271
    %v987 = vmul.f32 %v985, %v272
    %v990 = vrot.slane %v986, 2
    %v991 = vrot.slane %v987, 2
    %v992 = vsel %vm513, %v990, %v991
    %v995 = vadd.f32 %v899, %v992
    %v996 = vadd.f32 %v900, %v991
    %v997 = vstv %s315
    %v998 = vmul.f32 %v997, %v271
    %v999 = vmul.f32 %v997, %v272
    %v1002 = vrot.slane %v998, 2
    %v1003 = vrot.slane %v999, 2
    %v1004 = vsel %vm513, %v1002, %v1003
    %v1007 = vadd.f32 %v911, %v1004
    %v1008 = vadd.f32 %v912, %v1003
    %v1009 = vstv %s327
    %v1010 = vmul.f32 %v1009, %v271
    %v1011 = vmul.f32 %v1009, %v272
    %v1014 = vrot.slane %v1010, 2
    %v1015 = vrot.slane %v1011, 2
    %v1016 = vsel %vm513, %v1014, %v1015
    %v1019 = vadd.f32 %v923, %v1016
    %v1020 = vadd.f32 %v924, %v1015
    %v1021 = vstv %s339
    %v1022 = vmul.f32 %v1021, %v271
    %v1023 = vmul.f32 %v1021, %v272
    %v1026 = vrot.slane %v1022, 2
    %v1027 = vrot.slane %v1023, 2
    %v1028 = vsel %vm513, %v1026, %v1027
    %v1031 = vadd.f32 %v935, %v1028
    %v1032 = vadd.f32 %v936, %v1027
    %v1033 = vstv %s351
    %v1034 = vmul.f32 %v1033, %v271
    %v1035 = vmul.f32 %v1033, %v272
    %v1038 = vrot.slane %v1034, 2
    %v1039 = vrot.slane %v1035, 2
    %v1040 = vsel %vm513, %v1038, %v1039
    %v1043 = vadd.f32 %v947, %v1040
    %v1044 = vadd.f32 %v948, %v1039
    %v1045 = vstv %s363
    %v1046 = vmul.f32 %v1045, %v271
    %v1047 = vmul.f32 %v1045, %v272
    %v1050 = vrot.slane %v1046, 2
    %v1051 = vrot.slane %v1047, 2
    %v1052 = vsel %vm513, %v1050, %v1051
    %v1055 = vadd.f32 %v959, %v1052
    %v1056 = vadd.f32 %v960, %v1051
    %v1057 = vstv %s375
    %v1058 = vmul.f32 %v1057, %v271
    %v1059 = vmul.f32 %v1057, %v272
    %v1062 = vrot.slane %v1058, 2
    %v1063 = vrot.slane %v1059, 2
    %v1064 = vsel %vm513, %v1062, %v1063
    %v1067 = vadd.f32 %v971, %v1064
    %v1068 = vadd.f32 %v972, %v1063
    %v1069 = vstv %s292
    %v1070 = vmul.f32 %v1069, %v273
    %v1071 = vmul.f32 %v1069, %v274
    %v1072 = vadd.f32 %v983, %v1070
    %v1073 = vadd.f32 %v984, %v1071
    %v1074 = vstv %s304
    %v1075 = vmul.f32 %v1074, %v273
    %v1076 = vmul.f32 %v1074, %v274
    %v1077 = vadd.f32 %v995, %v1075
    %v1078 = vadd.f32 %v996, %v1076
    %v1079 = vstv %s316
    %v1080 = vmul.f32 %v1079, %v273
    %v1081 = vmul.f32 %v1079, %v274
    %v1082 = vadd.f32 %v1007, %v1080
    %v1083 = vadd.f32 %v1008, %v1081
    %v1084 = vstv %s328
    %v1085 = vmul.f32 %v1084, %v273
    %v1086 = vmul.f32 %v1084, %v274
    %v1087 = vadd.f32 %v1019, %v1085
    %v1088 = vadd.f32 %v1020, %v1086
    %v1089 = vstv %s340
    %v1090 = vmul.f32 %v1089, %v273
    %v1091 = vmul.f32 %v1089, %v274
    %v1092 = vadd.f32 %v1031, %v1090
    %v1093 = vadd.f32 %v1032, %v1091
    %v1094 = vstv %s352
    %v1095 = vmul.f32 %v1094, %v273
    %v1096 = vmul.f32 %v1094, %v274
    %v1097 = vadd.f32 %v1043, %v1095
    %v1098 = vadd.f32 %v1044, %v1096
    %v1099 = vstv %s364
    %v1100 = vmul.f32 %v1099, %v273
    %v1101 = vmul.f32 %v1099, %v274
    %v1102 = vadd.f32 %v1055, %v1100
    %v1103 = vadd.f32 %v1056, %v1101
    %v1104 = vstv %s376
    %v1105 = vmul.f32 %v1104, %v273
    %v1106 = vmul.f32 %v1104, %v274
    %v1107 = vadd.f32 %v1067, %v1105
    %v1108 = vadd.f32 %v1068, %v1106
    %v1109 = vstv %s293
    %v1110 = vmul.f32 %v1109, %v273
    %v1111 = vmul.f32 %v1109, %v274
    %v1114 = vrot.slane %v1110, 1
    %v1115 = vrot.slane %v1111, 1
    %v1116 = vsel %vm416, %v1114, %v1115
    %v1119 = vadd.f32 %v1072, %v1116
    %v1120 = vadd.f32 %v1073, %v1115
    %v1121 = vstv %s305
    %v1122 = vmul.f32 %v1121, %v273
    %v1123 = vmul.f32 %v1121, %v274
    %v1126 = vrot.slane %v1122, 1
    %v1127 = vrot.slane %v1123, 1
    %v1128 = vsel %vm416, %v1126, %v1127
    %v1131 = vadd.f32 %v1077, %v1128
    %v1132 = vadd.f32 %v1078, %v1127
    %v1133 = vstv %s317
    %v1134 = vmul.f32 %v1133, %v273
    %v1135 = vmul.f32 %v1133, %v274
    %v1138 = vrot.slane %v1134, 1
    %v1139 = vrot.slane %v1135, 1
    %v1140 = vsel %vm416, %v1138, %v1139
    %v1143 = vadd.f32 %v1082, %v1140
    %v1144 = vadd.f32 %v1083, %v1139
    %v1145 = vstv %s329
    %v1146 = vmul.f32 %v1145, %v273
    %v1147 = vmul.f32 %v1145, %v274
    %v1150 = vrot.slane %v1146, 1
    %v1151 = vrot.slane %v1147, 1
    %v1152 = vsel %vm416, %v1150, %v1151
    %v1155 = vadd.f32 %v1087, %v1152
    %v1156 = vadd.f32 %v1088, %v1151
    %v1157 = vstv %s341
    %v1158 = vmul.f32 %v1157, %v273
    %v1159 = vmul.f32 %v1157, %v274
    %v1162 = vrot.slane %v1158, 1
    %v1163 = vrot.slane %v1159, 1
    %v1164 = vsel %vm416, %v1162, %v1163
    %v1167 = vadd.f32 %v1092, %v1164
    %v1168 = vadd.f32 %v1093, %v1163
    %v1169 = vstv %s353
    %v1170 = vmul.f32 %v1169, %v273
    %v1171 = vmul.f32 %v1169, %v274
    %v1174 = vrot.slane %v1170, 1
    %v1175 = vrot.slane %v1171, 1
    %v1176 = vsel %vm416, %v1174, %v1175
    %v1179 = vadd.f32 %v1097, %v1176
    %v1180 = vadd.f32 %v1098, %v1175
    %v1181 = vstv %s365
    %v1182 = vmul.f32 %v1181, %v273
    %v1183 = vmul.f32 %v1181, %v274
    %v1186 = vrot.slane %v1182, 1
    %v1187 = vrot.slane %v1183, 1
    %v1188 = vsel %vm416, %v1186, %v1187
    %v1191 = vadd.f32 %v1102, %v1188
    %v1192 = vadd.f32 %v1103, %v1187
    %v1193 = vstv %s377
    %v1194 = vmul.f32 %v1193, %v273
    %v1195 = vmul.f32 %v1193, %v274
    %v1198 = vrot.slane %v1194, 1
    %v1199 = vrot.slane %v1195, 1
    %v1200 = vsel %vm416, %v1198, %v1199
    %v1203 = vadd.f32 %v1107, %v1200
    %v1204 = vadd.f32 %v1108, %v1199
    %v1205 = vstv %s294
    %v1206 = vmul.f32 %v1205, %v273
    %v1207 = vmul.f32 %v1205, %v274
    %v1210 = vrot.slane %v1206, 2
    %v1211 = vrot.slane %v1207, 2
    %v1212 = vsel %vm513, %v1210, %v1211
    %v1215 = vadd.f32 %v1119, %v1212
    %v1216 = vadd.f32 %v1120, %v1211
    %v1217 = vstv %s306
    %v1218 = vmul.f32 %v1217, %v273
    %v1219 = vmul.f32 %v1217, %v274
    %v1222 = vrot.slane %v1218, 2
    %v1223 = vrot.slane %v1219, 2
    %v1224 = vsel %vm513, %v1222, %v1223
    %v1227 = vadd.f32 %v1131, %v1224
    %v1228 = vadd.f32 %v1132, %v1223
    %v1229 = vstv %s318
    %v1230 = vmul.f32 %v1229, %v273
    %v1231 = vmul.f32 %v1229, %v274
    %v1234 = vrot.slane %v1230, 2
    %v1235 = vrot.slane %v1231, 2
    %v1236 = vsel %vm513, %v1234, %v1235
    %v1239 = vadd.f32 %v1143, %v1236
    %v1240 = vadd.f32 %v1144, %v1235
    %v1241 = vstv %s330
    %v1242 = vmul.f32 %v1241, %v273
    %v1243 = vmul.f32 %v1241, %v274
    %v1246 = vrot.slane %v1242, 2
    %v1247 = vrot.slane %v1243, 2
    %v1248 = vsel %vm513, %v1246, %v1247
    %v1251 = vadd.f32 %v1155, %v1248
    %v1252 = vadd.f32 %v1156, %v1247
    %v1253 = vstv %s342
    %v1254 = vmul.f32 %v1253, %v273
    %v1255 = vmul.f32 %v1253, %v274
    %v1258 = vrot.slane %v1254, 2
    %v1259 = vrot.slane %v1255, 2
    %v1260 = vsel %vm513, %v1258, %v1259
    %v1263 = vadd.f32 %v1167, %v1260
    %v1264 = vadd.f32 %v1168, %v1259
    %v1265 = vstv %s354
    %v1266 = vmul.f32 %v1265, %v273
    %v1267 = vmul.f32 %v1265, %v274
    %v1270 = vrot.slane %v1266, 2
    %v1271 = vrot.slane %v1267, 2
    %v1272 = vsel %vm513, %v1270, %v1271
    %v1275 = vadd.f32 %v1179, %v1272
    %v1276 = vadd.f32 %v1180, %v1271
    %v1277 = vstv %s366
    %v1278 = vmul.f32 %v1277, %v273
    %v1279 = vmul.f32 %v1277, %v274
    %v1282 = vrot.slane %v1278, 2
    %v1283 = vrot.slane %v1279, 2
    %v1284 = vsel %vm513, %v1282, %v1283
    %v1287 = vadd.f32 %v1191, %v1284
    %v1288 = vadd.f32 %v1192, %v1283
    %v1289 = vstv %s378
    %v1290 = vmul.f32 %v1289, %v273
    %v1291 = vmul.f32 %v1289, %v274
    %v1294 = vrot.slane %v1290, 2
    %v1295 = vrot.slane %v1291, 2
    %v1296 = vsel %vm513, %v1294, %v1295
    %v1299 = vadd.f32 %v1203, %v1296
    %v1300 = vadd.f32 %v1204, %v1295
    %v1301 = vstv %s379
    %v1302 = vadd.f32 %v1215, %v1301
    %v1303 = vadd.f32 %v1216, %v1301
    %v1304 = vxor.u32 %v1302, 2147483648
    %v1305 = vxor.u32 %v1303, 2147483648
    %v1306 = vmul.f32 %v1304, 1.442695
    %v1307 = vpow.pop %v1306
    %v1308 = vmul.f32 %v1305, 1.442695
    %v1309 = vpow.pop %v1308
    %v1310 = vadd.f32 %v1307, 1.0
    %v1311 = vadd.f32 %v1309, 1.0
    %v1312 = vrcp.pop %v1310
    %v1313 = vmul.f32 1.0, %v1312
    %v1314 = vrcp.pop %v1311
    %v1315 = vmul.f32 1.0, %v1314
    %v1316 = vstv %s380
    %v1317 = vadd.f32 %v1227, %v1316
    %v1318 = vadd.f32 %v1228, %v1316
    %v1319 = vxor.u32 %v1317, 2147483648
    %v1320 = vxor.u32 %v1318, 2147483648
    %v1321 = vmul.f32 %v1319, 1.442695
    %v1322 = vpow.pop %v1321
    %v1323 = vmul.f32 %v1320, 1.442695
    %v1324 = vpow.pop %v1323
    %v1325 = vadd.f32 %v1322, 1.0
    %v1326 = vadd.f32 %v1324, 1.0
    %v1327 = vrcp.pop %v1325
    %v1328 = vmul.f32 1.0, %v1327
    %v1329 = vrcp.pop %v1326
    %v1330 = vmul.f32 1.0, %v1329
    %v1331 = vstv %s381
    %v1332 = vadd.f32 %v1239, %v1331
    %v1333 = vadd.f32 %v1240, %v1331
    %v1334 = vxor.u32 %v1332, 2147483648
    %v1335 = vxor.u32 %v1333, 2147483648
    %v1336 = vmul.f32 %v1334, 1.442695
    %v1337 = vpow.pop %v1336
    %v1338 = vmul.f32 %v1335, 1.442695
    %v1339 = vpow.pop %v1338
    %v1340 = vadd.f32 %v1337, 1.0
    %v1341 = vadd.f32 %v1339, 1.0
    %v1342 = vrcp.pop %v1340
    %v1343 = vmul.f32 1.0, %v1342
    %v1344 = vrcp.pop %v1341
    %v1345 = vmul.f32 1.0, %v1344
    %v1346 = vstv %s382
    %v1347 = vadd.f32 %v1251, %v1346
    %v1348 = vadd.f32 %v1252, %v1346
    %v1349 = vxor.u32 %v1347, 2147483648
    %v1350 = vxor.u32 %v1348, 2147483648
    %v1351 = vmul.f32 %v1349, 1.442695
    %v1352 = vpow.pop %v1351
    %v1353 = vmul.f32 %v1350, 1.442695
    %v1354 = vpow.pop %v1353
    %v1355 = vadd.f32 %v1352, 1.0
    %v1356 = vadd.f32 %v1354, 1.0
    %v1357 = vrcp.pop %v1355
    %v1358 = vmul.f32 1.0, %v1357
    %v1359 = vrcp.pop %v1356
    %v1360 = vmul.f32 1.0, %v1359
    %v1361 = vstv %s383
    %v1362 = vadd.f32 %v1263, %v1361
    %v1363 = vadd.f32 %v1264, %v1361
    %v1364 = vxor.u32 %v1362, 2147483648
    %v1365 = vxor.u32 %v1363, 2147483648
    %v1366 = vmul.f32 %v1364, 1.442695
    %v1367 = vpow.pop %v1366
    %v1368 = vmul.f32 %v1365, 1.442695
    %v1369 = vpow.pop %v1368
    %v1370 = vadd.f32 %v1367, 1.0
    %v1371 = vadd.f32 %v1369, 1.0
    %v1372 = vrcp.pop %v1370
    %v1373 = vmul.f32 1.0, %v1372
    %v1374 = vrcp.pop %v1371
    %v1375 = vmul.f32 1.0, %v1374
    %v1376 = vstv %s384
    %v1377 = vadd.f32 %v1275, %v1376
    %v1378 = vadd.f32 %v1276, %v1376
    %v1379 = vxor.u32 %v1377, 2147483648
    %v1380 = vxor.u32 %v1378, 2147483648
    %v1381 = vmul.f32 %v1379, 1.442695
    %v1382 = vpow.pop %v1381
    %v1383 = vmul.f32 %v1380, 1.442695
    %v1384 = vpow.pop %v1383
    %v1385 = vadd.f32 %v1382, 1.0
    %v1386 = vadd.f32 %v1384, 1.0
    %v1387 = vrcp.pop %v1385
    %v1388 = vmul.f32 1.0, %v1387
    %v1389 = vrcp.pop %v1386
    %v1390 = vmul.f32 1.0, %v1389
    %v1391 = vstv %s385
    %v1392 = vadd.f32 %v1287, %v1391
    %v1393 = vadd.f32 %v1288, %v1391
    %v1394 = vxor.u32 %v1392, 2147483648
    %v1395 = vxor.u32 %v1393, 2147483648
    %v1396 = vmul.f32 %v1394, 1.442695
    %v1397 = vpow.pop %v1396
    %v1398 = vmul.f32 %v1395, 1.442695
    %v1399 = vpow.pop %v1398
    %v1400 = vadd.f32 %v1397, 1.0
    %v1401 = vadd.f32 %v1399, 1.0
    %v1402 = vrcp.pop %v1400
    %v1403 = vmul.f32 1.0, %v1402
    %v1404 = vrcp.pop %v1401
    %v1405 = vmul.f32 1.0, %v1404
    %v1406 = vstv %s386
    %v1407 = vadd.f32 %v1299, %v1406
    %v1408 = vadd.f32 %v1300, %v1406
    %v1409 = vxor.u32 %v1407, 2147483648
    %v1410 = vxor.u32 %v1408, 2147483648
    %v1411 = vmul.f32 %v1409, 1.442695
    %v1412 = vpow.pop %v1411
    %v1413 = vmul.f32 %v1410, 1.442695
    %v1414 = vpow.pop %v1413
    %v1415 = vadd.f32 %v1412, 1.0
    %v1416 = vadd.f32 %v1414, 1.0
    %v1417 = vrcp.pop %v1415
    %v1418 = vmul.f32 1.0, %v1417
    %v1419 = vrcp.pop %v1416
    %v1420 = vmul.f32 1.0, %v1419
    %v1423 = vrot.slane %v1328, 2
    %v1424 = vrot.slane %v1330, 2
    %v1425 = vsel %vm513, %v1423, %v1424
    %vm1431 = vcmask 1043456
    %v1432 = vrot.slane %v1343, 4
    %v1433 = vrot.slane %v1345, 4
    %v1434 = vsel %vm1431, %v1432, %v1433
    %vm1440 = vcmask 1041408
    %v1441 = vrot.slane %v1358, 6
    %v1442 = vrot.slane %v1360, 6
    %v1443 = vsel %vm1440, %v1441, %v1442
    %v1448 = vrot.slane %v1388, 2
    %v1449 = vrot.slane %v1390, 2
    %v1450 = vsel %vm513, %v1448, %v1449
    %v1456 = vrot.slane %v1403, 4
    %v1457 = vrot.slane %v1405, 4
    %v1458 = vsel %vm1431, %v1456, %v1457
    %v1464 = vrot.slane %v1418, 6
    %v1465 = vrot.slane %v1420, 6
    %v1466 = vsel %vm1440, %v1464, %v1465
    %v1469 = vsel %vm513, %v1315, %v1423
    %v1470 = vsel %vm1431, %v1424, %v1432
    %v1471 = vsel %vm1440, %v1433, %v1441
    %v1472 = vsel %vm513, %v1375, %v1448
    %v1473 = vsel %vm1431, %v1449, %v1456
    %v1474 = vsel %vm1440, %v1457, %v1464
    %v1475 = vmul.f32 %v387, %v275
    %v1476 = vmul.f32 %v387, %v276
    %v1477 = vmul.f32 %v390, %v275
    %v1478 = vmul.f32 %v390, %v276
    %v1479 = vmul.f32 %v393, %v275
    %v1480 = vmul.f32 %v393, %v276
    %v1481 = vmul.f32 %v396, %v275
    %v1482 = vmul.f32 %v396, %v276
    %v1483 = vmul.f32 %v399, %v275
    %v1484 = vmul.f32 %v399, %v276
    %v1485 = vmul.f32 %v402, %v275
    %v1486 = vmul.f32 %v402, %v276
    %v1487 = vmul.f32 %v405, %v275
    %v1488 = vmul.f32 %v405, %v276
    %v1489 = vmul.f32 %v408, %v275
    %v1490 = vmul.f32 %v408, %v276
    %v1491 = vmul.f32 %v411, %v275
    %v1492 = vmul.f32 %v411, %v276
    %v1495 = vrot.slane %v1491, 1
    %v1496 = vrot.slane %v1492, 1
    %v1497 = vsel %vm416, %v1495, %v1496
    %v1500 = vadd.f32 %v1475, %v1497
    %v1501 = vadd.f32 %v1476, %v1496
    %v1502 = vmul.f32 %v424, %v275
    %v1503 = vmul.f32 %v424, %v276
    %v1506 = vrot.slane %v1502, 1
    %v1507 = vrot.slane %v1503, 1
    %v1508 = vsel %vm416, %v1506, %v1507
    %v1511 = vadd.f32 %v1477, %v1508
    %v1512 = vadd.f32 %v1478, %v1507
    %v1513 = vmul.f32 %v436, %v275
    %v1514 = vmul.f32 %v436, %v276
    %v1517 = vrot.slane %v1513, 1
    %v1518 = vrot.slane %v1514, 1
    %v1519 = vsel %vm416, %v1517, %v1518
    %v1522 = vadd.f32 %v1479, %v1519
    %v1523 = vadd.f32 %v1480, %v1518
    %v1524 = vmul.f32 %v448, %v275
    %v1525 = vmul.f32 %v448, %v276
    %v1528 = vrot.slane %v1524, 1
    %v1529 = vrot.slane %v1525, 1
    %v1530 = vsel %vm416, %v1528, %v1529
    %v1533 = vadd.f32 %v1481, %v1530
    %v1534 = vadd.f32 %v1482, %v1529
    %v1535 = vmul.f32 %v460, %v275
    %v1536 = vmul.f32 %v460, %v276
    %v1539 = vrot.slane %v1535, 1
    %v1540 = vrot.slane %v1536, 1
    %v1541 = vsel %vm416, %v1539, %v1540
    %v1544 = vadd.f32 %v1483, %v1541
    %v1545 = vadd.f32 %v1484, %v1540
    %v1546 = vmul.f32 %v472, %v275
    %v1547 = vmul.f32 %v472, %v276
    %v1550 = vrot.slane %v1546, 1
    %v1551 = vrot.slane %v1547, 1
    %v1552 = vsel %vm416, %v1550, %v1551
    %v1555 = vadd.f32 %v1485, %v1552
    %v1556 = vadd.f32 %v1486, %v1551
    %v1557 = vmul.f32 %v484, %v275
    %v1558 = vmul.f32 %v484, %v276
    %v1561 = vrot.slane %v1557, 1
    %v1562 = vrot.slane %v1558, 1
    %v1563 = vsel %vm416, %v1561, %v1562
    %v1566 = vadd.f32 %v1487, %v1563
    %v1567 = vadd.f32 %v1488, %v1562
    %v1568 = vmul.f32 %v496, %v275
    %v1569 = vmul.f32 %v496, %v276
    %v1572 = vrot.slane %v1568, 1
    %v1573 = vrot.slane %v1569, 1
    %v1574 = vsel %vm416, %v1572, %v1573
    %v1577 = vadd.f32 %v1489, %v1574
    %v1578 = vadd.f32 %v1490, %v1573
    %v1579 = vmul.f32 %v508, %v275
    %v1580 = vmul.f32 %v508, %v276
    %v1583 = vrot.slane %v1579, 2
    %v1584 = vrot.slane %v1580, 2
    %v1585 = vsel %vm513, %v1583, %v1584
    %v1588 = vadd.f32 %v1500, %v1585
    %v1589 = vadd.f32 %v1501, %v1584
    %v1590 = vmul.f32 %v521, %v275
    %v1591 = vmul.f32 %v521, %v276
    %v1594 = vrot.slane %v1590, 2
    %v1595 = vrot.slane %v1591, 2
    %v1596 = vsel %vm513, %v1594, %v1595
    %v1599 = vadd.f32 %v1511, %v1596
    %v1600 = vadd.f32 %v1512, %v1595
    %v1601 = vmul.f32 %v533, %v275
    %v1602 = vmul.f32 %v533, %v276
    %v1605 = vrot.slane %v1601, 2
    %v1606 = vrot.slane %v1602, 2
    %v1607 = vsel %vm513, %v1605, %v1606
    %v1610 = vadd.f32 %v1522, %v1607
    %v1611 = vadd.f32 %v1523, %v1606
    %v1612 = vmul.f32 %v545, %v275
    %v1613 = vmul.f32 %v545, %v276
    %v1616 = vrot.slane %v1612, 2
    %v1617 = vrot.slane %v1613, 2
    %v1618 = vsel %vm513, %v1616, %v1617
    %v1621 = vadd.f32 %v1533, %v1618
    %v1622 = vadd.f32 %v1534, %v1617
    %v1623 = vmul.f32 %v557, %v275
    %v1624 = vmul.f32 %v557, %v276
    %v1627 = vrot.slane %v1623, 2
    %v1628 = vrot.slane %v1624, 2
    %v1629 = vsel %vm513, %v1627, %v1628
    %v1632 = vadd.f32 %v1544, %v1629
    %v1633 = vadd.f32 %v1545, %v1628
    %v1634 = vmul.f32 %v569, %v275
    %v1635 = vmul.f32 %v569, %v276
    %v1638 = vrot.slane %v1634, 2
    %v1639 = vrot.slane %v1635, 2
    %v1640 = vsel %vm513, %v1638, %v1639
    %v1643 = vadd.f32 %v1555, %v1640
    %v1644 = vadd.f32 %v1556, %v1639
    %v1645 = vmul.f32 %v581, %v275
    %v1646 = vmul.f32 %v581, %v276
    %v1649 = vrot.slane %v1645, 2
    %v1650 = vrot.slane %v1646, 2
    %v1651 = vsel %vm513, %v1649, %v1650
    %v1654 = vadd.f32 %v1566, %v1651
    %v1655 = vadd.f32 %v1567, %v1650
    %v1656 = vmul.f32 %v593, %v275
    %v1657 = vmul.f32 %v593, %v276
    %v1660 = vrot.slane %v1656, 2
    %v1661 = vrot.slane %v1657, 2
    %v1662 = vsel %vm513, %v1660, %v1661
    %v1665 = vadd.f32 %v1577, %v1662
    %v1666 = vadd.f32 %v1578, %v1661
    %v1667 = vmul.f32 %v605, %v277
    %v1668 = vmul.f32 %v605, %v278
    %v1669 = vadd.f32 %v1588, %v1667
    %v1670 = vadd.f32 %v1589, %v1668
    %v1671 = vmul.f32 %v610, %v277
    %v1672 = vmul.f32 %v610, %v278
    %v1673 = vadd.f32 %v1599, %v1671
    %v1674 = vadd.f32 %v1600, %v1672
    %v1675 = vmul.f32 %v615, %v277
    %v1676 = vmul.f32 %v615, %v278
    %v1677 = vadd.f32 %v1610, %v1675
    %v1678 = vadd.f32 %v1611, %v1676
    %v1679 = vmul.f32 %v620, %v277
    %v1680 = vmul.f32 %v620, %v278
    %v1681 = vadd.f32 %v1621, %v1679
    %v1682 = vadd.f32 %v1622, %v1680
    %v1683 = vmul.f32 %v625, %v277
    %v1684 = vmul.f32 %v625, %v278
    %v1685 = vadd.f32 %v1632, %v1683
    %v1686 = vadd.f32 %v1633, %v1684
    %v1687 = vmul.f32 %v630, %v277
    %v1688 = vmul.f32 %v630, %v278
    %v1689 = vadd.f32 %v1643, %v1687
    %v1690 = vadd.f32 %v1644, %v1688
    %v1691 = vmul.f32 %v635, %v277
    %v1692 = vmul.f32 %v635, %v278
    %v1693 = vadd.f32 %v1654, %v1691
    %v1694 = vadd.f32 %v1655, %v1692
    %v1695 = vmul.f32 %v640, %v277
    %v1696 = vmul.f32 %v640, %v278
    %v1697 = vadd.f32 %v1665, %v1695
    %v1698 = vadd.f32 %v1666, %v1696
    %v1699 = vmul.f32 %v645, %v277
    %v1700 = vmul.f32 %v645, %v278
    %v1703 = vrot.slane %v1699, 1
    %v1704 = vrot.slane %v1700, 1
    %v1705 = vsel %vm416, %v1703, %v1704
    %v1708 = vadd.f32 %v1669, %v1705
    %v1709 = vadd.f32 %v1670, %v1704
    %v1710 = vmul.f32 %v657, %v277
    %v1711 = vmul.f32 %v657, %v278
    %v1714 = vrot.slane %v1710, 1
    %v1715 = vrot.slane %v1711, 1
    %v1716 = vsel %vm416, %v1714, %v1715
    %v1719 = vadd.f32 %v1673, %v1716
    %v1720 = vadd.f32 %v1674, %v1715
    %v1721 = vmul.f32 %v669, %v277
    %v1722 = vmul.f32 %v669, %v278
    %v1725 = vrot.slane %v1721, 1
    %v1726 = vrot.slane %v1722, 1
    %v1727 = vsel %vm416, %v1725, %v1726
    %v1730 = vadd.f32 %v1677, %v1727
    %v1731 = vadd.f32 %v1678, %v1726
    %v1732 = vmul.f32 %v681, %v277
    %v1733 = vmul.f32 %v681, %v278
    %v1736 = vrot.slane %v1732, 1
    %v1737 = vrot.slane %v1733, 1
    %v1738 = vsel %vm416, %v1736, %v1737
    %v1741 = vadd.f32 %v1681, %v1738
    %v1742 = vadd.f32 %v1682, %v1737
    %v1743 = vmul.f32 %v693, %v277
    %v1744 = vmul.f32 %v693, %v278
    %v1747 = vrot.slane %v1743, 1
    %v1748 = vrot.slane %v1744, 1
    %v1749 = vsel %vm416, %v1747, %v1748
    %v1752 = vadd.f32 %v1685, %v1749
    %v1753 = vadd.f32 %v1686, %v1748
    %v1754 = vmul.f32 %v705, %v277
    %v1755 = vmul.f32 %v705, %v278
    %v1758 = vrot.slane %v1754, 1
    %v1759 = vrot.slane %v1755, 1
    %v1760 = vsel %vm416, %v1758, %v1759
    %v1763 = vadd.f32 %v1689, %v1760
    %v1764 = vadd.f32 %v1690, %v1759
    %v1765 = vmul.f32 %v717, %v277
    %v1766 = vmul.f32 %v717, %v278
    %v1769 = vrot.slane %v1765, 1
    %v1770 = vrot.slane %v1766, 1
    %v1771 = vsel %vm416, %v1769, %v1770
    %v1774 = vadd.f32 %v1693, %v1771
    %v1775 = vadd.f32 %v1694, %v1770
    %v1776 = vmul.f32 %v729, %v277
    %v1777 = vmul.f32 %v729, %v278
    %v1780 = vrot.slane %v1776, 1
    %v1781 = vrot.slane %v1777, 1
    %v1782 = vsel %vm416, %v1780, %v1781
    %v1785 = vadd.f32 %v1697, %v1782
    %v1786 = vadd.f32 %v1698, %v1781
    %v1787 = vmul.f32 %v741, %v277
    %v1788 = vmul.f32 %v741, %v278
    %v1791 = vrot.slane %v1787, 2
    %v1792 = vrot.slane %v1788, 2
    %v1793 = vsel %vm513, %v1791, %v1792
    %v1796 = vadd.f32 %v1708, %v1793
    %v1797 = vadd.f32 %v1709, %v1792
    %v1798 = vmul.f32 %v753, %v277
    %v1799 = vmul.f32 %v753, %v278
    %v1802 = vrot.slane %v1798, 2
    %v1803 = vrot.slane %v1799, 2
    %v1804 = vsel %vm513, %v1802, %v1803
    %v1807 = vadd.f32 %v1719, %v1804
    %v1808 = vadd.f32 %v1720, %v1803
    %v1809 = vmul.f32 %v765, %v277
    %v1810 = vmul.f32 %v765, %v278
    %v1813 = vrot.slane %v1809, 2
    %v1814 = vrot.slane %v1810, 2
    %v1815 = vsel %vm513, %v1813, %v1814
    %v1818 = vadd.f32 %v1730, %v1815
    %v1819 = vadd.f32 %v1731, %v1814
    %v1820 = vmul.f32 %v777, %v277
    %v1821 = vmul.f32 %v777, %v278
    %v1824 = vrot.slane %v1820, 2
    %v1825 = vrot.slane %v1821, 2
    %v1826 = vsel %vm513, %v1824, %v1825
    %v1829 = vadd.f32 %v1741, %v1826
    %v1830 = vadd.f32 %v1742, %v1825
    %v1831 = vmul.f32 %v789, %v277
    %v1832 = vmul.f32 %v789, %v278
    %v1835 = vrot.slane %v1831, 2
    %v1836 = vrot.slane %v1832, 2
    %v1837 = vsel %vm513, %v1835, %v1836
    %v1840 = vadd.f32 %v1752, %v1837
    %v1841 = vadd.f32 %v1753, %v1836
    %v1842 = vmul.f32 %v801, %v277
    %v1843 = vmul.f32 %v801, %v278
    %v1846 = vrot.slane %v1842, 2
    %v1847 = vrot.slane %v1843, 2
    %v1848 = vsel %vm513, %v1846, %v1847
    %v1851 = vadd.f32 %v1763, %v1848
    %v1852 = vadd.f32 %v1764, %v1847
    %v1853 = vmul.f32 %v813, %v277
    %v1854 = vmul.f32 %v813, %v278
    %v1857 = vrot.slane %v1853, 2
    %v1858 = vrot.slane %v1854, 2
    %v1859 = vsel %vm513, %v1857, %v1858
    %v1862 = vadd.f32 %v1774, %v1859
    %v1863 = vadd.f32 %v1775, %v1858
    %v1864 = vmul.f32 %v825, %v277
    %v1865 = vmul.f32 %v825, %v278
    %v1868 = vrot.slane %v1864, 2
    %v1869 = vrot.slane %v1865, 2
    %v1870 = vsel %vm513, %v1868, %v1869
    %v1873 = vadd.f32 %v1785, %v1870
    %v1874 = vadd.f32 %v1786, %v1869
    %v1875 = vmul.f32 %v837, %v279
    %v1876 = vmul.f32 %v837, %v280
    %v1877 = vadd.f32 %v1796, %v1875
    %v1878 = vadd.f32 %v1797, %v1876
    %v1879 = vmul.f32 %v842, %v279
    %v1880 = vmul.f32 %v842, %v280
    %v1881 = vadd.f32 %v1807, %v1879
    %v1882 = vadd.f32 %v1808, %v1880
    %v1883 = vmul.f32 %v847, %v279
    %v1884 = vmul.f32 %v847, %v280
    %v1885 = vadd.f32 %v1818, %v1883
    %v1886 = vadd.f32 %v1819, %v1884
    %v1887 = vmul.f32 %v852, %v279
    %v1888 = vmul.f32 %v852, %v280
    %v1889 = vadd.f32 %v1829, %v1887
    %v1890 = vadd.f32 %v1830, %v1888
    %v1891 = vmul.f32 %v857, %v279
    %v1892 = vmul.f32 %v857, %v280
    %v1893 = vadd.f32 %v1840, %v1891
    %v1894 = vadd.f32 %v1841, %v1892
    %v1895 = vmul.f32 %v862, %v279
    %v1896 = vmul.f32 %v862, %v280
    %v1897 = vadd.f32 %v1851, %v1895
    %v1898 = vadd.f32 %v1852, %v1896
    %v1899 = vmul.f32 %v867, %v279
    %v1900 = vmul.f32 %v867, %v280
    %v1901 = vadd.f32 %v1862, %v1899
    %v1902 = vadd.f32 %v1863, %v1900
    %v1903 = vmul.f32 %v872, %v279
    %v1904 = vmul.f32 %v872, %v280
    %v1905 = vadd.f32 %v1873, %v1903
    %v1906 = vadd.f32 %v1874, %v1904
    %v1907 = vmul.f32 %v877, %v279
    %v1908 = vmul.f32 %v877, %v280
    %v1911 = vrot.slane %v1907, 1
    %v1912 = vrot.slane %v1908, 1
    %v1913 = vsel %vm416, %v1911, %v1912
    %v1916 = vadd.f32 %v1877, %v1913
    %v1917 = vadd.f32 %v1878, %v1912
    %v1918 = vmul.f32 %v889, %v279
    %v1919 = vmul.f32 %v889, %v280
    %v1922 = vrot.slane %v1918, 1
    %v1923 = vrot.slane %v1919, 1
    %v1924 = vsel %vm416, %v1922, %v1923
    %v1927 = vadd.f32 %v1881, %v1924
    %v1928 = vadd.f32 %v1882, %v1923
    %v1929 = vmul.f32 %v901, %v279
    %v1930 = vmul.f32 %v901, %v280
    %v1933 = vrot.slane %v1929, 1
    %v1934 = vrot.slane %v1930, 1
    %v1935 = vsel %vm416, %v1933, %v1934
    %v1938 = vadd.f32 %v1885, %v1935
    %v1939 = vadd.f32 %v1886, %v1934
    %v1940 = vmul.f32 %v913, %v279
    %v1941 = vmul.f32 %v913, %v280
    %v1944 = vrot.slane %v1940, 1
    %v1945 = vrot.slane %v1941, 1
    %v1946 = vsel %vm416, %v1944, %v1945
    %v1949 = vadd.f32 %v1889, %v1946
    %v1950 = vadd.f32 %v1890, %v1945
    %v1951 = vmul.f32 %v925, %v279
    %v1952 = vmul.f32 %v925, %v280
    %v1955 = vrot.slane %v1951, 1
    %v1956 = vrot.slane %v1952, 1
    %v1957 = vsel %vm416, %v1955, %v1956
    %v1960 = vadd.f32 %v1893, %v1957
    %v1961 = vadd.f32 %v1894, %v1956
    %v1962 = vmul.f32 %v937, %v279
    %v1963 = vmul.f32 %v937, %v280
    %v1966 = vrot.slane %v1962, 1
    %v1967 = vrot.slane %v1963, 1
    %v1968 = vsel %vm416, %v1966, %v1967
    %v1971 = vadd.f32 %v1897, %v1968
    %v1972 = vadd.f32 %v1898, %v1967
    %v1973 = vmul.f32 %v949, %v279
    %v1974 = vmul.f32 %v949, %v280
    %v1977 = vrot.slane %v1973, 1
    %v1978 = vrot.slane %v1974, 1
    %v1979 = vsel %vm416, %v1977, %v1978
    %v1982 = vadd.f32 %v1901, %v1979
    %v1983 = vadd.f32 %v1902, %v1978
    %v1984 = vmul.f32 %v961, %v279
    %v1985 = vmul.f32 %v961, %v280
    %v1988 = vrot.slane %v1984, 1
    %v1989 = vrot.slane %v1985, 1
    %v1990 = vsel %vm416, %v1988, %v1989
    %v1993 = vadd.f32 %v1905, %v1990
    %v1994 = vadd.f32 %v1906, %v1989
    %v1995 = vmul.f32 %v973, %v279
    %v1996 = vmul.f32 %v973, %v280
    %v1999 = vrot.slane %v1995, 2
    %v2000 = vrot.slane %v1996, 2
    %v2001 = vsel %vm513, %v1999, %v2000
    %v2004 = vadd.f32 %v1916, %v2001
    %v2005 = vadd.f32 %v1917, %v2000
    %v2006 = vmul.f32 %v985, %v279
    %v2007 = vmul.f32 %v985, %v280
    %v2010 = vrot.slane %v2006, 2
    %v2011 = vrot.slane %v2007, 2
    %v2012 = vsel %vm513, %v2010, %v2011
    %v2015 = vadd.f32 %v1927, %v2012
    %v2016 = vadd.f32 %v1928, %v2011
    %v2017 = vmul.f32 %v997, %v279
    %v2018 = vmul.f32 %v997, %v280
    %v2021 = vrot.slane %v2017, 2
    %v2022 = vrot.slane %v2018, 2
    %v2023 = vsel %vm513, %v2021, %v2022
    %v2026 = vadd.f32 %v1938, %v2023
    %v2027 = vadd.f32 %v1939, %v2022
    %v2028 = vmul.f32 %v1009, %v279
    %v2029 = vmul.f32 %v1009, %v280
    %v2032 = vrot.slane %v2028, 2
    %v2033 = vrot.slane %v2029, 2
    %v2034 = vsel %vm513, %v2032, %v2033
    %v2037 = vadd.f32 %v1949, %v2034
    %v2038 = vadd.f32 %v1950, %v2033
    %v2039 = vmul.f32 %v1021, %v279
    %v2040 = vmul.f32 %v1021, %v280
    %v2043 = vrot.slane %v2039, 2
    %v2044 = vrot.slane %v2040, 2
    %v2045 = vsel %vm513, %v2043, %v2044
    %v2048 = vadd.f32 %v1960, %v2045
    %v2049 = vadd.f32 %v1961, %v2044
    %v2050 = vmul.f32 %v1033, %v279
    %v2051 = vmul.f32 %v1033, %v280
    %v2054 = vrot.slane %v2050, 2
    %v2055 = vrot.slane %v2051, 2
    %v2056 = vsel %vm513, %v2054, %v2055
    %v2059 = vadd.f32 %v1971, %v2056
    %v2060 = vadd.f32 %v1972, %v2055
    %v2061 = vmul.f32 %v1045, %v279
    %v2062 = vmul.f32 %v1045, %v280
    %v2065 = vrot.slane %v2061, 2
    %v2066 = vrot.slane %v2062, 2
    %v2067 = vsel %vm513, %v2065, %v2066
    %v2070 = vadd.f32 %v1982, %v2067
    %v2071 = vadd.f32 %v1983, %v2066
    %v2072 = vmul.f32 %v1057, %v279
    %v2073 = vmul.f32 %v1057, %v280
    %v2076 = vrot.slane %v2072, 2
    %v2077 = vrot.slane %v2073, 2
    %v2078 = vsel %vm513, %v2076, %v2077
    %v2081 = vadd.f32 %v1993, %v2078
    %v2082 = vadd.f32 %v1994, %v2077
    %v2083 = vmul.f32 %v1069, %v281
    %v2084 = vmul.f32 %v1069, %v282
    %v2085 = vadd.f32 %v2004, %v2083
    %v2086 = vadd.f32 %v2005, %v2084
    %v2087 = vmul.f32 %v1074, %v281
    %v2088 = vmul.f32 %v1074, %v282
    %v2089 = vadd.f32 %v2015, %v2087
    %v2090 = vadd.f32 %v2016, %v2088
    %v2091 = vmul.f32 %v1079, %v281
    %v2092 = vmul.f32 %v1079, %v282
    %v2093 = vadd.f32 %v2026, %v2091
    %v2094 = vadd.f32 %v2027, %v2092
    %v2095 = vmul.f32 %v1084, %v281
    %v2096 = vmul.f32 %v1084, %v282
    %v2097 = vadd.f32 %v2037, %v2095
    %v2098 = vadd.f32 %v2038, %v2096
    %v2099 = vmul.f32 %v1089, %v281
    %v2100 = vmul.f32 %v1089, %v282
    %v2101 = vadd.f32 %v2048, %v2099
    %v2102 = vadd.f32 %v2049, %v2100
    %v2103 = vmul.f32 %v1094, %v281
    %v2104 = vmul.f32 %v1094, %v282
    %v2105 = vadd.f32 %v2059, %v2103
    %v2106 = vadd.f32 %v2060, %v2104
    %v2107 = vmul.f32 %v1099, %v281
    %v2108 = vmul.f32 %v1099, %v282
    %v2109 = vadd.f32 %v2070, %v2107
    %v2110 = vadd.f32 %v2071, %v2108
    %v2111 = vmul.f32 %v1104, %v281
    %v2112 = vmul.f32 %v1104, %v282
    %v2113 = vadd.f32 %v2081, %v2111
    %v2114 = vadd.f32 %v2082, %v2112
    %v2115 = vmul.f32 %v1109, %v281
    %v2116 = vmul.f32 %v1109, %v282
    %v2119 = vrot.slane %v2115, 1
    %v2120 = vrot.slane %v2116, 1
    %v2121 = vsel %vm416, %v2119, %v2120
    %v2124 = vadd.f32 %v2085, %v2121
    %v2125 = vadd.f32 %v2086, %v2120
    %v2126 = vmul.f32 %v1121, %v281
    %v2127 = vmul.f32 %v1121, %v282
    %v2130 = vrot.slane %v2126, 1
    %v2131 = vrot.slane %v2127, 1
    %v2132 = vsel %vm416, %v2130, %v2131
    %v2135 = vadd.f32 %v2089, %v2132
    %v2136 = vadd.f32 %v2090, %v2131
    %v2137 = vmul.f32 %v1133, %v281
    %v2138 = vmul.f32 %v1133, %v282
    %v2141 = vrot.slane %v2137, 1
    %v2142 = vrot.slane %v2138, 1
    %v2143 = vsel %vm416, %v2141, %v2142
    %v2146 = vadd.f32 %v2093, %v2143
    %v2147 = vadd.f32 %v2094, %v2142
    %v2148 = vmul.f32 %v1145, %v281
    %v2149 = vmul.f32 %v1145, %v282
    %v2152 = vrot.slane %v2148, 1
    %v2153 = vrot.slane %v2149, 1
    %v2154 = vsel %vm416, %v2152, %v2153
    %v2157 = vadd.f32 %v2097, %v2154
    %v2158 = vadd.f32 %v2098, %v2153
    %v2159 = vmul.f32 %v1157, %v281
    %v2160 = vmul.f32 %v1157, %v282
    %v2163 = vrot.slane %v2159, 1
    %v2164 = vrot.slane %v2160, 1
    %v2165 = vsel %vm416, %v2163, %v2164
    %v2168 = vadd.f32 %v2101, %v2165
    %v2169 = vadd.f32 %v2102, %v2164
    %v2170 = vmul.f32 %v1169, %v281
    %v2171 = vmul.f32 %v1169, %v282
    %v2174 = vrot.slane %v2170, 1
    %v2175 = vrot.slane %v2171, 1
    %v2176 = vsel %vm416, %v2174, %v2175
    %v2179 = vadd.f32 %v2105, %v2176
    %v2180 = vadd.f32 %v2106, %v2175
    %v2181 = vmul.f32 %v1181, %v281
    %v2182 = vmul.f32 %v1181, %v282
    %v2185 = vrot.slane %v2181, 1
    %v2186 = vrot.slane %v2182, 1
    %v2187 = vsel %vm416, %v2185, %v2186
    %v2190 = vadd.f32 %v2109, %v2187
    %v2191 = vadd.f32 %v2110, %v2186
    %v2192 = vmul.f32 %v1193, %v281
    %v2193 = vmul.f32 %v1193, %v282
    %v2196 = vrot.slane %v2192, 1
    %v2197 = vrot.slane %v2193, 1
    %v2198 = vsel %vm416, %v2196, %v2197
    %v2201 = vadd.f32 %v2113, %v2198
    %v2202 = vadd.f32 %v2114, %v2197
    %v2203 = vmul.f32 %v1205, %v281
    %v2204 = vmul.f32 %v1205, %v282
    %v2207 = vrot.slane %v2203, 2
    %v2208 = vrot.slane %v2204, 2
    %v2209 = vsel %vm513, %v2207, %v2208
    %v2212 = vadd.f32 %v2124, %v2209
    %v2213 = vadd.f32 %v2125, %v2208
    %v2214 = vmul.f32 %v1217, %v281
    %v2215 = vmul.f32 %v1217, %v282
    %v2218 = vrot.slane %v2214, 2
    %v2219 = vrot.slane %v2215, 2
    %v2220 = vsel %vm513, %v2218, %v2219
    %v2223 = vadd.f32 %v2135, %v2220
    %v2224 = vadd.f32 %v2136, %v2219
    %v2225 = vmul.f32 %v1229, %v281
    %v2226 = vmul.f32 %v1229, %v282
    %v2229 = vrot.slane %v2225, 2
    %v2230 = vrot.slane %v2226, 2
    %v2231 = vsel %vm513, %v2229, %v2230
    %v2234 = vadd.f32 %v2146, %v2231
    %v2235 = vadd.f32 %v2147, %v2230
    %v2236 = vmul.f32 %v1241, %v281
    %v2237 = vmul.f32 %v1241, %v282
    %v2240 = vrot.slane %v2236, 2
    %v2241 = vrot.slane %v2237, 2
    %v2242 = vsel %vm513, %v2240, %v2241
    %v2245 = vadd.f32 %v2157, %v2242
    %v2246 = vadd.f32 %v2158, %v2241
    %v2247 = vmul.f32 %v1253, %v281
    %v2248 = vmul.f32 %v1253, %v282
    %v2251 = vrot.slane %v2247, 2
    %v2252 = vrot.slane %v2248, 2
    %v2253 = vsel %vm513, %v2251, %v2252
    %v2256 = vadd.f32 %v2168, %v2253
    %v2257 = vadd.f32 %v2169, %v2252
    %v2258 = vmul.f32 %v1265, %v281
    %v2259 = vmul.f32 %v1265, %v282
    %v2262 = vrot.slane %v2258, 2
    %v2263 = vrot.slane %v2259, 2
    %v2264 = vsel %vm513, %v2262, %v2263
    %v2267 = vadd.f32 %v2179, %v2264
    %v2268 = vadd.f32 %v2180, %v2263
    %v2269 = vmul.f32 %v1277, %v281
    %v2270 = vmul.f32 %v1277, %v282
    %v2273 = vrot.slane %v2269, 2
    %v2274 = vrot.slane %v2270, 2
    %v2275 = vsel %vm513, %v2273, %v2274
    %v2278 = vadd.f32 %v2190, %v2275
    %v2279 = vadd.f32 %v2191, %v2274
    %v2280 = vmul.f32 %v1289, %v281
    %v2281 = vmul.f32 %v1289, %v282
    %v2284 = vrot.slane %v2280, 2
    %v2285 = vrot.slane %v2281, 2
    %v2286 = vsel %vm513, %v2284, %v2285
    %v2289 = vadd.f32 %v2201, %v2286
    %v2290 = vadd.f32 %v2202, %v2285
    %v2291 = vadd.f32 %v2212, %v1301
    %v2292 = vadd.f32 %v2213, %v1301
    %v2293 = vxor.u32 %v2291, 2147483648
    %v2294 = vxor.u32 %v2292, 2147483648
    %v2295 = vmul.f32 %v2293, 1.442695
    %v2296 = vpow.pop %v2295
    %v2297 = vmul.f32 %v2294, 1.442695
    %v2298 = vpow.pop %v2297
    %v2299 = vadd.f32 %v2296, 1.0
    %v2300 = vadd.f32 %v2298, 1.0
    %v2301 = vrcp.pop %v2299
    %v2302 = vmul.f32 1.0, %v2301
    %v2303 = vrcp.pop %v2300
    %v2304 = vmul.f32 1.0, %v2303
    %v2305 = vadd.f32 %v2223, %v1316
    %v2306 = vadd.f32 %v2224, %v1316
    %v2307 = vxor.u32 %v2305, 2147483648
    %v2308 = vxor.u32 %v2306, 2147483648
    %v2309 = vmul.f32 %v2307, 1.442695
    %v2310 = vpow.pop %v2309
    %v2311 = vmul.f32 %v2308, 1.442695
    %v2312 = vpow.pop %v2311
    %v2313 = vadd.f32 %v2310, 1.0
    %v2314 = vadd.f32 %v2312, 1.0
    %v2315 = vrcp.pop %v2313
    %v2316 = vmul.f32 1.0, %v2315
    %v2317 = vrcp.pop %v2314
    %v2318 = vmul.f32 1.0, %v2317
    %v2319 = vadd.f32 %v2234, %v1331
    %v2320 = vadd.f32 %v2235, %v1331
    %v2321 = vxor.u32 %v2319, 2147483648
    %v2322 = vxor.u32 %v2320, 2147483648
    %v2323 = vmul.f32 %v2321, 1.442695
    %v2324 = vpow.pop %v2323
    %v2325 = vmul.f32 %v2322, 1.442695
    %v2326 = vpow.pop %v2325
    %v2327 = vadd.f32 %v2324, 1.0
    %v2328 = vadd.f32 %v2326, 1.0
    %v2329 = vrcp.pop %v2327
    %v2330 = vmul.f32 1.0, %v2329
    %v2331 = vrcp.pop %v2328
    %v2332 = vmul.f32 1.0, %v2331
    %v2333 = vadd.f32 %v2245, %v1346
    %v2334 = vadd.f32 %v2246, %v1346
    %v2335 = vxor.u32 %v2333, 2147483648
    %v2336 = vxor.u32 %v2334, 2147483648
    %v2337 = vmul.f32 %v2335, 1.442695
    %v2338 = vpow.pop %v2337
    %v2339 = vmul.f32 %v2336, 1.442695
    %v2340 = vpow.pop %v2339
    %v2341 = vadd.f32 %v2338, 1.0
    %v2342 = vadd.f32 %v2340, 1.0
    %v2343 = vrcp.pop %v2341
    %v2344 = vmul.f32 1.0, %v2343
    %v2345 = vrcp.pop %v2342
    %v2346 = vmul.f32 1.0, %v2345
    %v2347 = vadd.f32 %v2256, %v1361
    %v2348 = vadd.f32 %v2257, %v1361
    %v2349 = vxor.u32 %v2347, 2147483648
    %v2350 = vxor.u32 %v2348, 2147483648
    %v2351 = vmul.f32 %v2349, 1.442695
    %v2352 = vpow.pop %v2351
    %v2353 = vmul.f32 %v2350, 1.442695
    %v2354 = vpow.pop %v2353
    %v2355 = vadd.f32 %v2352, 1.0
    %v2356 = vadd.f32 %v2354, 1.0
    %v2357 = vrcp.pop %v2355
    %v2358 = vmul.f32 1.0, %v2357
    %v2359 = vrcp.pop %v2356
    %v2360 = vmul.f32 1.0, %v2359
    %v2361 = vadd.f32 %v2267, %v1376
    %v2362 = vadd.f32 %v2268, %v1376
    %v2363 = vxor.u32 %v2361, 2147483648
    %v2364 = vxor.u32 %v2362, 2147483648
    %v2365 = vmul.f32 %v2363, 1.442695
    %v2366 = vpow.pop %v2365
    %v2367 = vmul.f32 %v2364, 1.442695
    %v2368 = vpow.pop %v2367
    %v2369 = vadd.f32 %v2366, 1.0
    %v2370 = vadd.f32 %v2368, 1.0
    %v2371 = vrcp.pop %v2369
    %v2372 = vmul.f32 1.0, %v2371
    %v2373 = vrcp.pop %v2370
    %v2374 = vmul.f32 1.0, %v2373
    %v2375 = vadd.f32 %v2278, %v1391
    %v2376 = vadd.f32 %v2279, %v1391
    %v2377 = vxor.u32 %v2375, 2147483648
    %v2378 = vxor.u32 %v2376, 2147483648
    %v2379 = vmul.f32 %v2377, 1.442695
    %v2380 = vpow.pop %v2379
    %v2381 = vmul.f32 %v2378, 1.442695
    %v2382 = vpow.pop %v2381
    %v2383 = vadd.f32 %v2380, 1.0
    %v2384 = vadd.f32 %v2382, 1.0
    %v2385 = vrcp.pop %v2383
    %v2386 = vmul.f32 1.0, %v2385
    %v2387 = vrcp.pop %v2384
    %v2388 = vmul.f32 1.0, %v2387
    %v2389 = vadd.f32 %v2289, %v1406
    %v2390 = vadd.f32 %v2290, %v1406
    %v2391 = vxor.u32 %v2389, 2147483648
    %v2392 = vxor.u32 %v2390, 2147483648
    %v2393 = vmul.f32 %v2391, 1.442695
    %v2394 = vpow.pop %v2393
    %v2395 = vmul.f32 %v2392, 1.442695
    %v2396 = vpow.pop %v2395
    %v2397 = vadd.f32 %v2394, 1.0
    %v2398 = vadd.f32 %v2396, 1.0
    %v2399 = vrcp.pop %v2397
    %v2400 = vmul.f32 1.0, %v2399
    %v2401 = vrcp.pop %v2398
    %v2402 = vmul.f32 1.0, %v2401
    %v2405 = vrot.slane %v2316, 2
    %v2406 = vrot.slane %v2318, 2
    %v2407 = vsel %vm513, %v2405, %v2406
    %v2413 = vrot.slane %v2330, 4
    %v2414 = vrot.slane %v2332, 4
    %v2415 = vsel %vm1431, %v2413, %v2414
    %v2421 = vrot.slane %v2344, 6
    %v2422 = vrot.slane %v2346, 6
    %v2423 = vsel %vm1440, %v2421, %v2422
    %v2428 = vrot.slane %v2372, 2
    %v2429 = vrot.slane %v2374, 2
    %v2430 = vsel %vm513, %v2428, %v2429
    %v2436 = vrot.slane %v2386, 4
    %v2437 = vrot.slane %v2388, 4
    %v2438 = vsel %vm1431, %v2436, %v2437
    %v2444 = vrot.slane %v2400, 6
    %v2445 = vrot.slane %v2402, 6
    %v2446 = vsel %vm1440, %v2444, %v2445
    %v2449 = vsel %vm513, %v2304, %v2405
    %v2450 = vsel %vm1431, %v2406, %v2413
    %v2451 = vsel %vm1440, %v2414, %v2421
    %v2452 = vsel %vm513, %v2360, %v2428
    %v2453 = vsel %vm1431, %v2429, %v2436
    %v2454 = vsel %vm1440, %v2437, %v2444
    %2455 = vst [vmem:[#allocation11] sm:$0xff] %v1313
    %2456 = vst [vmem:[#allocation11 + $0x8] sm:$0xff] %v1469
    %2457 = vst [vmem:[#allocation11 + $0x10] sm:$0xff] %v1425
    %2458 = vst [vmem:[#allocation11 + $0x18] sm:$0xff] %v1470
    %2459 = vst [vmem:[#allocation11 + $0x20] sm:$0xff] %v1434
    %2460 = vst [vmem:[#allocation11 + $0x28] sm:$0xff] %v1471
    %2461 = vst [vmem:[#allocation11 + $0x30] sm:$0xff] %v1443
    %2462 = vst [vmem:[#allocation11 + $0x38] sm:$0xff] %v1373
    %2463 = vst [vmem:[#allocation11 + $0x40] sm:$0xff] %v1472
    %2464 = vst [vmem:[#allocation11 + $0x48] sm:$0xff] %v1450
    %2465 = vst [vmem:[#allocation11 + $0x50] sm:$0xff] %v1473
    %2466 = vst [vmem:[#allocation11 + $0x58] sm:$0xff] %v1458
    %2467 = vst [vmem:[#allocation11 + $0x60] sm:$0xff] %v1474
    %2468 = vst [vmem:[#allocation11 + $0x68] sm:$0xff] %v1466
    %2469 = vst [vmem:[#allocation11 + $0x70] sm:$0xff] %v2302
    %2470 = vst [vmem:[#allocation11 + $0x78] sm:$0xff] %v2449
    %2471 = vst [vmem:[#allocation11 + $0x80] sm:$0xff] %v2407
    %2472 = vst [vmem:[#allocation11 + $0x88] sm:$0xff] %v2450
    %2473 = vst [vmem:[#allocation11 + $0x90] sm:$0xff] %v2415
    %2474 = vst [vmem:[#allocation11 + $0x98] sm:$0xff] %v2451
    %2475 = vst [vmem:[#allocation11 + $0xa0] sm:$0xff] %v2423
    %2476 = vst [vmem:[#allocation11 + $0xa8] sm:$0xff] %v2358
    %2477 = vst [vmem:[#allocation11 + $0xb0] sm:$0xff] %v2452
    %2478 = vst [vmem:[#allocation11 + $0xb8] sm:$0xff] %v2430
    %2479 = vst [vmem:[#allocation11 + $0xc0] sm:$0xff] %v2453
    %2480 = vst [vmem:[#allocation11 + $0xc8] sm:$0xff] %v2438
    %2481 = vst [vmem:[#allocation11 + $0xd0] sm:$0xff] %v2454
    %2482 = vst [vmem:[#allocation11 + $0xd8] sm:$0xff] %v2446
    // Predicated region
    $region38: #{tpu_custom_call.1} parent=1 // pred_check
      _
    $region39: #{tpu_custom_call.1} parent=1 // pred_check_branch
      %2484 = sbr.rel (0) target = $region41
    $region40: #{tpu_custom_call.1} parent=1 // pred_region
      %s2486 = ssub.s32 3584, 3584
      %2487 = vsyncadd [#allocation4], %s2486
      %s2488 = sshll.u32 [#allocation11], 4
      %s2489 = int_to_ptr.vmem [resolvable:$true] %s2488
      %2494 = dma.vmem_to_hbm [thread:$0]  %s2489, 3584, %s5, [#allocation4], 128, 128, 8
    $region41: #{tpu_custom_call.1} parent=1 // pred_fallthru
      _
    // Predicated region
    $region42: #{tpu_custom_call.1} parent=1 // pred_check
      _
    $region43: #{tpu_custom_call.1} parent=1 // pred_check_branch
      %2496 = sbr.rel (0) target = $region45
    $region44: #{tpu_custom_call.1} parent=1 // pred_region
      %2497 = dma.done [#allocation4], 3584
    $region45: #{tpu_custom_call.1} parent=1 // pred_fallthru
      _
    %2498 = vsyncpa [#allocation3], 1
    %2499 = vsyncpa [#allocation7], 1
    %2500 = vsyncpa [#allocation4], 1
    %2501 = vsyncpa [#allocation5], 1
    %2502 = vsyncpa [#allocation10], 1

</llo_original>
